<compile_context>
chip_gen: v6e
topology: v6e:2x2x1
jax: 0.10.0
libtpu: 0.0.40
codegen_flags: <defaults>
</compile_context>

<pallas_src>
import functools
import math

import jax
import jax.numpy as jnp
from jax.experimental import pallas as pl
from jax.experimental.pallas import tpu as pltpu


def mha_kernel(q_in_ref, k_in_ref, v_in_ref,
               wq_ref, bq_ref, wk_ref, bk_ref, wv_ref, bv_ref,
               wo_ref, bo_ref, gamma_ref, beta_ref,
               out_ref,
               *, block_b, nq, nk, h, d_k_pad, d_v_pad, d_model, eps):
    f32 = jnp.float32

    xq = q_in_ref[...]              # (block_b*nq, Dp) activation dtype
    xk = k_in_ref[...]              # (block_b*nk, Dp)
    xv = v_in_ref[...]
    cdt = xq.dtype                  # MXU operand dtype (bf16 if inputs are bf16)

    # Fused QKV projections: one 2-D matmul each, K = Dp, N = h*d_k_pad
    # (lane-dense).  The 1/sqrt(d_k) softmax scale is folded into wq/bq.
    q = jnp.dot(xq, wq_ref[...], preferred_element_type=f32) + bq_ref[...]
    k = jnp.dot(xk, wk_ref[...], preferred_element_type=f32) + bk_ref[...]
    v = jnp.dot(xv, wv_ref[...], preferred_element_type=f32) + bv_ref[...]

    def to_heads(x, n):
        # (block_b*n, h*dp) -> (block_b*h, n, dp).  dp is a multiple of 128 so
        # the head split is on lane-tile boundaries (no masked lane slices).
        dp = x.shape[-1] // h
        return (x.astype(cdt)
                .reshape(block_b, n, h, dp)
                .transpose(0, 2, 1, 3)
                .reshape(block_b * h, n, dp))

    qh = to_heads(q, nq)            # (block_b*h, nq, d_k_pad)
    kh = to_heads(k, nk)            # (block_b*h, nk, d_k_pad)
    vh = to_heads(v, nk)            # (block_b*h, nk, d_v_pad)

    # Attention scores + softmax, batch and heads fused into the batch dim.
    att = jnp.einsum('bqc,bkc->bqk', qh, kh, preferred_element_type=f32)
    m = jnp.max(att, axis=-1, keepdims=True)
    p = jnp.exp(att - m)
    l = jnp.sum(p, axis=-1, keepdims=True)
    inv = pl.reciprocal(l, approx=True)       # EUP slot
    inv = inv * (2.0 - l * inv)               # one Newton step -> ~f32 accurate
    pn = (p * inv).astype(cdt)                # MXU operand dtype

    o = jnp.einsum('bqk,bkv->bqv', pn, vh, preferred_element_type=f32)

    # Output projection: heads folded back to lanes, head reduction done in the
    # MXU accumulator (single contraction with K = h*d_v_pad).
    oc = (o.astype(cdt)
          .reshape(block_b, h, nq, d_v_pad)
          .transpose(0, 2, 1, 3)
          .reshape(block_b * nq, h * d_v_pad))
    out = jnp.dot(oc, wo_ref[...], preferred_element_type=f32) + bo_ref[...]

    # Dropout is identity at inference.  Residual + LayerNorm in f32 over the
    # real d_model columns only (padded columns of xq and out are zero).
    res = xq.astype(f32) + out
    mean = jnp.sum(res, axis=-1, keepdims=True) * (1.0 / d_model)
    col = jax.lax.broadcasted_iota(jnp.int32, res.shape, 1)
    diff = jnp.where(col < d_model, res - mean, 0.0)
    var = jnp.sum(diff * diff, axis=-1, keepdims=True) * (1.0 / d_model)
    y = diff * jax.lax.rsqrt(var + eps) * gamma_ref[...] + beta_ref[...]
    out_ref[...] = y.astype(out_ref.dtype)


def multi_head_attention(queries, keys, values, params, *, h, d_k, d_v,
                         eps=1e-5, block_b=None):
    """queries: (B, nq, d_model); keys/values: (B, nk, d_model)."""
    B, nq, d_model = queries.shape
    nk = keys.shape[1]
    f32 = jnp.float32
    LANE = 128

    def pad_to_lane(n):
        return ((n + LANE - 1) // LANE) * LANE

    Dp = pad_to_lane(d_model)
    dkp = pad_to_lane(d_k)
    dvp = pad_to_lane(d_v)

    if block_b is None:
        # ~512-row activation slabs, but keep >= 2 grid steps when B >= 2 so
        # v7x's two TensorCores both get work on the "parallel" grid axis.
        target = max(1, 512 // max(nq, 1))
        block_b = max(1, min(target, B // 2 if B >= 2 else B))
        while B % block_b:
            block_b -= 1
    assert B % block_b == 0, "block_b must divide the batch size"
    # Row blocks must be sublane-aligned (or full-extent).
    if block_b != B and ((block_b * nq) % 8 or (block_b * nk) % 8):
        block_b = B

    scale = 1.0 / math.sqrt(d_k)
    act_dtype = queries.dtype

    # ---- parameter prep (wrapper-side layout plumbing) --------------------
    def prep_qkv(w, b, dsub, s=1.0):
        dsub_p = pad_to_lane(dsub)
        wt = (w.astype(f32) * s).T.reshape(d_model, h, dsub)
        wt = jnp.pad(wt, ((0, Dp - d_model), (0, 0), (0, dsub_p - dsub)))
        bt = jnp.pad((b.astype(f32) * s).reshape(h, dsub),
                     ((0, 0), (0, dsub_p - dsub)))
        return (wt.reshape(Dp, h * dsub_p).astype(act_dtype),
                bt.reshape(1, h * dsub_p))

    wq_f, bq_f = prep_qkv(params["wq"], params["bq"], d_k, s=scale)
    wk_f, bk_f = prep_qkv(params["wk"], params["bk"], d_k)
    wv_f, bv_f = prep_qkv(params["wv"], params["bv"], d_v)

    wo_t = params["wo"].astype(f32).T.reshape(h, d_v, d_model)
    wo_t = jnp.pad(wo_t, ((0, 0), (0, dvp - d_v), (0, Dp - d_model)))
    wo_f = wo_t.reshape(h * dvp, Dp).astype(act_dtype)
    bo_f = jnp.pad(params["bo"].astype(f32), (0, Dp - d_model))[None, :]
    gamma_f = jnp.pad(params["gamma"].astype(f32), (0, Dp - d_model))[None, :]
    beta_f = jnp.pad(params["beta"].astype(f32), (0, Dp - d_model))[None, :]

    # ---- activations: lane-dense padded 2-D row slabs ----------------------
    def pad_act(x):
        return jnp.pad(x, ((0, 0), (0, 0), (0, Dp - d_model)))

    q2 = pad_act(queries).reshape(B * nq, Dp)
    k2 = pad_act(keys).reshape(B * nk, Dp)
    v2 = pad_act(values).reshape(B * nk, Dp)

    param_arrays = [wq_f, bq_f, wk_f, bk_f, wv_f, bv_f, wo_f, bo_f,
                    gamma_f, beta_f]

    # ---- explicit VMEM budget (coarse but generous) ------------------------
    itemsize = jnp.dtype(act_dtype).itemsize
    act_bytes = (2 * block_b * nq + 2 * block_b * nk) * Dp * itemsize
    par_bytes = sum(int(a.size) * a.dtype.itemsize for a in param_arrays)
    inter_bytes = 4 * (3 * block_b * (nq + 2 * nk) * h * max(dkp, dvp)
                       + 3 * block_b * h * nq * nk
                       + 8 * block_b * nq * Dp)
    est = 2 * act_bytes + 2 * par_bytes + inter_bytes      # double-buffering
    vmem_limit = int(min(max(2 * est, 32 << 20), 64 << 20))  # fits v7x VMEM

    kernel = functools.partial(mha_kernel, block_b=block_b, nq=nq, nk=nk, h=h,
                               d_k_pad=dkp, d_v_pad=dvp, d_model=d_model,
                               eps=eps)

    def row_spec(rows):
        return pl.BlockSpec((rows, Dp), lambda b: (b, 0))

    def const_spec(arr):
        # Constant index map: the block never changes, so the pipeline does
        # not re-DMA it per step.  (Single-buffering via pipeline_mode is a
        # further VMEM saving left out for portability across jax versions.)
        nd = arr.ndim
        return pl.BlockSpec(arr.shape, lambda b, _nd=nd: (0,) * _nd)

    out2 = pl.pallas_call(
        kernel,
        out_shape=jax.ShapeDtypeStruct((B * nq, Dp), act_dtype),
        grid_spec=pltpu.PrefetchScalarGridSpec(
            num_scalar_prefetch=0,
            grid=(B // block_b,),
            in_specs=[
                row_spec(block_b * nq), row_spec(block_b * nk),
                row_spec(block_b * nk),
                const_spec(wq_f), const_spec(bq_f),
                const_spec(wk_f), const_spec(bk_f),
                const_spec(wv_f), const_spec(bv_f),
                const_spec(wo_f), const_spec(bo_f),
                const_spec(gamma_f), const_spec(beta_f),
            ],
            out_specs=row_spec(block_b * nq),
        ),
        compiler_params=pltpu.CompilerParams(
            dimension_semantics=("parallel",),
            vmem_limit_bytes=vmem_limit),
    )(q2, k2, v2, wq_f, bq_f, wk_f, bk_f, wv_f, bv_f, wo_f, bo_f,
      gamma_f, beta_f)

    return out2.reshape(B, nq, Dp)[..., :d_model]


def _xavier_uniform(key, shape):
    # nn.init.xavier_uniform_ on a (fan_out, fan_in) Linear weight.
    fan_out, fan_in = shape
    bound = math.sqrt(6.0 / (fan_in + fan_out))
    return jax.random.uniform(key, shape, jnp.float32, -bound, bound)


def _reference(queries, keys, values, params, *, h, d_k, d_v, eps=1e-5):
    # Pure-JAX reference mirroring the PyTorch forward (eval mode).
    b_s, nq, d_model = queries.shape
    nk = keys.shape[1]
    q = queries @ params["wq"].T + params["bq"]
    k = keys @ params["wk"].T + params["bk"]
    v = values @ params["wv"].T + params["bv"]
    q = q.reshape(b_s, nq, h, d_k).transpose(0, 2, 1, 3)
    k = k.reshape(b_s, nk, h, d_k).transpose(0, 2, 3, 1)
    v = v.reshape(b_s, nk, h, d_v).transpose(0, 2, 1, 3)
    att = jnp.matmul(q, k) / math.sqrt(d_k)
    att = jax.nn.softmax(att, axis=-1)
    out = jnp.matmul(att, v).transpose(0, 2, 1, 3).reshape(b_s, nq, h * d_v)
    out = out @ params["wo"].T + params["bo"]
    res = queries + out
    mean = res.mean(-1, keepdims=True)
    var = ((res - mean) ** 2).mean(-1, keepdims=True)
    return (res - mean) / jnp.sqrt(var + eps) * params["gamma"] + params["beta"]


if __name__ == "__main__":
    # Small shapes consistent with the module: d_model=32, d_k=d_v=8, h=4.
    B, NQ, NK = 2, 8, 8
    D_MODEL, D_K, D_V, H = 32, 8, 8, 4

    root = jax.random.PRNGKey(0)
    ks = jax.random.split(root, 8)

    params = {
        "wq": _xavier_uniform(ks[0], (H * D_K, D_MODEL)),
        "wk": _xavier_uniform(ks[1], (H * D_K, D_MODEL)),
        "wv": _xavier_uniform(ks[2], (H * D_V, D_MODEL)),
        "wo": _xavier_uniform(ks[3], (D_MODEL, H * D_V)),
        "bq": jnp.zeros((H * D_K,), jnp.float32),
        "bk": jnp.zeros((H * D_K,), jnp.float32),
        "bv": jnp.zeros((H * D_V,), jnp.float32),
        "bo": jnp.zeros((D_MODEL,), jnp.float32),
        "gamma": jnp.ones((D_MODEL,), jnp.float32),
        "beta": jnp.zeros((D_MODEL,), jnp.float32),
    }
    # TODO(synk): training-mode dropout (p=0.1), the `can_be_stateful`
    # running-key/value cache, and the optional attention_mask /
    # attention_weights inputs are not modeled; inference semantics only.

    queries = jax.random.normal(ks[4], (B, NQ, D_MODEL), jnp.float32)
    keys = jax.random.normal(ks[5], (B, NK, D_MODEL), jnp.float32)
    values = jax.random.normal(ks[6], (B, NK, D_MODEL), jnp.float32)

    out = multi_head_attention(queries, keys, values, params,
                               h=H, d_k=D_K, d_v=D_V)
    out = jax.block_until_ready(out)

    ref = _reference(queries, keys, values, params, h=H, d_k=D_K, d_v=D_V)
    assert out.shape == (B, NQ, D_MODEL)
    # Kernel math is f32 end-to-end here (Newton-corrected softmax reciprocal);
    # the tolerance mainly absorbs default matmul-precision differences of the
    # pure-JAX reference on TPU.
    assert jnp.allclose(out, ref, atol=1e-2, rtol=1e-2), "mismatch vs reference"

    print("KERNEL_OK")
</pallas_src>

<mosaic_0001>
module attributes {stable_mosaic.version = 11 : i64} {
  func.func @mha_kernel(%arg0: i32, %arg1: memref<8x128xf32, #tpu.memory_space<vmem>>, %arg2: memref<8x128xf32, #tpu.memory_space<vmem>>, %arg3: memref<8x128xf32, #tpu.memory_space<vmem>>, %arg4: memref<128x512xf32, #tpu.memory_space<vmem>>, %arg5: memref<1x512xf32, #tpu.memory_space<vmem>>, %arg6: memref<128x512xf32, #tpu.memory_space<vmem>>, %arg7: memref<1x512xf32, #tpu.memory_space<vmem>>, %arg8: memref<128x512xf32, #tpu.memory_space<vmem>>, %arg9: memref<1x512xf32, #tpu.memory_space<vmem>>, %arg10: memref<512x128xf32, #tpu.memory_space<vmem>>, %arg11: memref<1x128xf32, #tpu.memory_space<vmem>>, %arg12: memref<1x128xf32, #tpu.memory_space<vmem>>, %arg13: memref<1x128xf32, #tpu.memory_space<vmem>>, %arg14: memref<8x128xf32, #tpu.memory_space<vmem>>) attributes {dimension_semantics = [#tpu.dimension_semantics<parallel>], iteration_bounds = array<i64: 2>, scalar_prefetch = 0 : i64, scratch_operands = 0 : i64, tpu.core_type = #tpu.core_type<tc>, window_params = [{transform_indices = @transform_0, window_bounds = array<i64: 8, 128>}, {transform_indices = @transform_1, window_bounds = array<i64: 8, 128>}, {transform_indices = @transform_2, window_bounds = array<i64: 8, 128>}, {pipeline_mode = #tpu.pipeline_mode<synchronous>, transform_indices = @transform_3, window_bounds = array<i64: 128, 512>}, {pipeline_mode = #tpu.pipeline_mode<synchronous>, transform_indices = @transform_4, window_bounds = array<i64: 1, 512>}, {pipeline_mode = #tpu.pipeline_mode<synchronous>, transform_indices = @transform_5, window_bounds = array<i64: 128, 512>}, {pipeline_mode = #tpu.pipeline_mode<synchronous>, transform_indices = @transform_6, window_bounds = array<i64: 1, 512>}, {pipeline_mode = #tpu.pipeline_mode<synchronous>, transform_indices = @transform_7, window_bounds = array<i64: 128, 512>}, {pipeline_mode = #tpu.pipeline_mode<synchronous>, transform_indices = @transform_8, window_bounds = array<i64: 1, 512>}, {pipeline_mode = #tpu.pipeline_mode<synchronous>, transform_indices = @transform_9, window_bounds = array<i64: 512, 128>}, {pipeline_mode = #tpu.pipeline_mode<synchronous>, transform_indices = @transform_10, window_bounds = array<i64: 1, 128>}, {pipeline_mode = #tpu.pipeline_mode<synchronous>, transform_indices = @transform_11, window_bounds = array<i64: 1, 128>}, {pipeline_mode = #tpu.pipeline_mode<synchronous>, transform_indices = @transform_12, window_bounds = array<i64: 1, 128>}, {transform_indices = @transform_13, window_bounds = array<i64: 8, 128>}]} {
    %c0 = arith.constant 0 : index
    %c0_0 = arith.constant 0 : index
    %0 = vector.load %arg1[%c0, %c0_0] : memref<8x128xf32, #tpu.memory_space<vmem>>, vector<8x128xf32>
    %c0_1 = arith.constant 0 : index
    %c0_2 = arith.constant 0 : index
    %1 = vector.load %arg2[%c0_1, %c0_2] : memref<8x128xf32, #tpu.memory_space<vmem>>, vector<8x128xf32>
    %c0_3 = arith.constant 0 : index
    %c0_4 = arith.constant 0 : index
    %2 = vector.load %arg3[%c0_3, %c0_4] : memref<8x128xf32, #tpu.memory_space<vmem>>, vector<8x128xf32>
    %c0_5 = arith.constant 0 : index
    %c0_6 = arith.constant 0 : index
    %3 = vector.load %arg4[%c0_5, %c0_6] : memref<128x512xf32, #tpu.memory_space<vmem>>, vector<128x512xf32>
    %cst = arith.constant dense<0.000000e+00> : vector<8x512xf32>
    %4 = tpu.matmul %0, %3, %cst {dimension_numbers = #tpu.dot_dimension_numbers<[1], [0], [0], [1], [0, 0, 1, 1], [], []>} : vector<8x128xf32>, vector<128x512xf32>, vector<8x512xf32> -> vector<8x512xf32>
    %c0_7 = arith.constant 0 : index
    %c0_8 = arith.constant 0 : index
    %5 = vector.load %arg5[%c0_7, %c0_8] : memref<1x512xf32, #tpu.memory_space<vmem>>, vector<1x512xf32>
    %6 = vector.broadcast %5 : vector<1x512xf32> to vector<8x512xf32>
    %7 = arith.addf %4, %6 : vector<8x512xf32>
    %c0_9 = arith.constant 0 : index
    %c0_10 = arith.constant 0 : index
    %8 = vector.load %arg6[%c0_9, %c0_10] : memref<128x512xf32, #tpu.memory_space<vmem>>, vector<128x512xf32>
    %cst_11 = arith.constant dense<0.000000e+00> : vector<8x512xf32>
    %9 = tpu.matmul %1, %8, %cst_11 {dimension_numbers = #tpu.dot_dimension_numbers<[1], [0], [0], [1], [0, 0, 1, 1], [], []>} : vector<8x128xf32>, vector<128x512xf32>, vector<8x512xf32> -> vector<8x512xf32>
    %c0_12 = arith.constant 0 : index
    %c0_13 = arith.constant 0 : index
    %10 = vector.load %arg7[%c0_12, %c0_13] : memref<1x512xf32, #tpu.memory_space<vmem>>, vector<1x512xf32>
    %11 = vector.broadcast %10 : vector<1x512xf32> to vector<8x512xf32>
    %12 = arith.addf %9, %11 : vector<8x512xf32>
    %c0_14 = arith.constant 0 : index
    %c0_15 = arith.constant 0 : index
    %13 = vector.load %arg8[%c0_14, %c0_15] : memref<128x512xf32, #tpu.memory_space<vmem>>, vector<128x512xf32>
    %cst_16 = arith.constant dense<0.000000e+00> : vector<8x512xf32>
    %14 = tpu.matmul %2, %13, %cst_16 {dimension_numbers = #tpu.dot_dimension_numbers<[1], [0], [0], [1], [0, 0, 1, 1], [], []>} : vector<8x128xf32>, vector<128x512xf32>, vector<8x512xf32> -> vector<8x512xf32>
    %c0_17 = arith.constant 0 : index
    %c0_18 = arith.constant 0 : index
    %15 = vector.load %arg9[%c0_17, %c0_18] : memref<1x512xf32, #tpu.memory_space<vmem>>, vector<1x512xf32>
    %16 = vector.broadcast %15 : vector<1x512xf32> to vector<8x512xf32>
    %17 = arith.addf %14, %16 : vector<8x512xf32>
    %18 = vector.shape_cast %7 : vector<8x512xf32> to vector<1x8x4x128xf32>
    %19 = tpu.transpose %18, [0, 2, 1, 3] : vector<1x8x4x128xf32> -> vector<1x4x8x128xf32>
    %20 = vector.shape_cast %19 : vector<1x4x8x128xf32> to vector<4x8x128xf32>
    %21 = vector.shape_cast %12 : vector<8x512xf32> to vector<1x8x4x128xf32>
    %22 = tpu.transpose %21, [0, 2, 1, 3] : vector<1x8x4x128xf32> -> vector<1x4x8x128xf32>
    %23 = vector.shape_cast %22 : vector<1x4x8x128xf32> to vector<4x8x128xf32>
    %24 = vector.shape_cast %17 : vector<8x512xf32> to vector<1x8x4x128xf32>
    %25 = tpu.transpose %24, [0, 2, 1, 3] : vector<1x8x4x128xf32> -> vector<1x4x8x128xf32>
    %26 = vector.shape_cast %25 : vector<1x4x8x128xf32> to vector<4x8x128xf32>
    "tpu.trace_start"() <{level = 10 : i32, message = "bqc,bkc->bqk"}> : () -> ()
    %cst_19 = arith.constant dense<0.000000e+00> : vector<4x8x8xf32>
    %27 = tpu.matmul %20, %23, %cst_19 {dimension_numbers = #tpu.dot_dimension_numbers<[2], [2], [1], [1], [0, 0, 0, 1, 1, 1], [0], [0]>} : vector<4x8x128xf32>, vector<4x8x128xf32>, vector<4x8x8xf32> -> vector<4x8x8xf32>
    "tpu.trace_stop"() : () -> ()
    %cst_20 = arith.constant dense<0xFF800000> : vector<4x8xf32>
    %28 = vector.multi_reduction <maximumf>, %27, %cst_20 [2] : vector<4x8x8xf32> to vector<4x8xf32>
    %29 = vector.shape_cast %28 : vector<4x8xf32> to vector<4x8x1xf32>
    %30 = vector.broadcast %29 : vector<4x8x1xf32> to vector<4x8x8xf32>
    %31 = arith.subf %27, %30 : vector<4x8x8xf32>
    %32 = math.exp %31 : vector<4x8x8xf32>
    %cst_21 = arith.constant dense<0.000000e+00> : vector<4x8xf32>
    %33 = vector.multi_reduction <add>, %32, %cst_21 [2] : vector<4x8x8xf32> to vector<4x8xf32>
    %34 = vector.shape_cast %33 : vector<4x8xf32> to vector<4x8x1xf32>
    %35 = tpu.reciprocal %34 {approx = true} : vector<4x8x1xf32> -> vector<4x8x1xf32>
    %36 = arith.mulf %34, %35 : vector<4x8x1xf32>
    %cst_22 = arith.constant 2.000000e+00 : f32
    %37 = vector.broadcast %cst_22 : f32 to vector<4x8x1xf32>
    %38 = arith.subf %37, %36 : vector<4x8x1xf32>
    %39 = arith.mulf %35, %38 : vector<4x8x1xf32>
    %40 = vector.broadcast %39 : vector<4x8x1xf32> to vector<4x8x8xf32>
    %41 = arith.mulf %32, %40 : vector<4x8x8xf32>
    "tpu.trace_start"() <{level = 10 : i32, message = "bqk,bkv->bqv"}> : () -> ()
    %cst_23 = arith.constant dense<0.000000e+00> : vector<4x8x128xf32>
    %42 = tpu.matmul %41, %26, %cst_23 {dimension_numbers = #tpu.dot_dimension_numbers<[2], [1], [1], [2], [0, 0, 0, 1, 1, 2], [0], [0]>} : vector<4x8x8xf32>, vector<4x8x128xf32>, vector<4x8x128xf32> -> vector<4x8x128xf32>
    "tpu.trace_stop"() : () -> ()
    %43 = vector.shape_cast %42 : vector<4x8x128xf32> to vector<1x4x8x128xf32>
    %44 = tpu.transpose %43, [0, 2, 1, 3] : vector<1x4x8x128xf32> -> vector<1x8x4x128xf32>
    %45 = vector.shape_cast %44 : vector<1x8x4x128xf32> to vector<8x512xf32>
    %c0_24 = arith.constant 0 : index
    %c0_25 = arith.constant 0 : index
    %46 = vector.load %arg10[%c0_24, %c0_25] : memref<512x128xf32, #tpu.memory_space<vmem>>, vector<512x128xf32>
    %cst_26 = arith.constant dense<0.000000e+00> : vector<8x128xf32>
    %47 = tpu.matmul %45, %46, %cst_26 {dimension_numbers = #tpu.dot_dimension_numbers<[1], [0], [0], [1], [0, 0, 1, 1], [], []>} : vector<8x512xf32>, vector<512x128xf32>, vector<8x128xf32> -> vector<8x128xf32>
    %c0_27 = arith.constant 0 : index
    %c0_28 = arith.constant 0 : index
    %48 = vector.load %arg11[%c0_27, %c0_28] : memref<1x128xf32, #tpu.memory_space<vmem>>, vector<1x128xf32>
    %49 = vector.broadcast %48 : vector<1x128xf32> to vector<8x128xf32>
    %50 = arith.addf %47, %49 : vector<8x128xf32>
    %51 = arith.addf %0, %50 : vector<8x128xf32>
    %cst_29 = arith.constant dense<0.000000e+00> : vector<8xf32>
    %52 = vector.multi_reduction <add>, %51, %cst_29 [1] : vector<8x128xf32> to vector<8xf32>
    %53 = vector.shape_cast %52 : vector<8xf32> to vector<8x1xf32>
    %cst_30 = arith.constant 3.125000e-02 : f32
    %54 = vector.broadcast %cst_30 : f32 to vector<8x1xf32>
    %55 = arith.mulf %53, %54 : vector<8x1xf32>
    %56 = tpu.iota {dimensions = array<i32: 1>} : vector<8x128xi32>
    %c32_i32 = arith.constant 32 : i32
    %57 = vector.broadcast %c32_i32 : i32 to vector<8x128xi32>
    %58 = arith.cmpi slt, %56, %57 : vector<8x128xi32>
    %59 = vector.broadcast %55 : vector<8x1xf32> to vector<8x128xf32>
    %60 = arith.subf %51, %59 : vector<8x128xf32>
    %cst_31 = arith.constant 0.000000e+00 : f32
    %61 = vector.broadcast %cst_31 : f32 to vector<8x128xf32>
    %62 = arith.select %58, %60, %61 : vector<8x128xi1>, vector<8x128xf32>
    %63 = arith.mulf %62, %62 : vector<8x128xf32>
    %cst_32 = arith.constant dense<0.000000e+00> : vector<8xf32>
    %64 = vector.multi_reduction <add>, %63, %cst_32 [1] : vector<8x128xf32> to vector<8xf32>
    %65 = vector.shape_cast %64 : vector<8xf32> to vector<8x1xf32>
    %cst_33 = arith.constant 3.125000e-02 : f32
    %66 = vector.broadcast %cst_33 : f32 to vector<8x1xf32>
    %67 = arith.mulf %65, %66 : vector<8x1xf32>
    %cst_34 = arith.constant 9.99999974E-6 : f32
    %68 = vector.broadcast %cst_34 : f32 to vector<8x1xf32>
    %69 = arith.addf %67, %68 : vector<8x1xf32>
    %70 = math.rsqrt %69 : vector<8x1xf32>
    %71 = vector.broadcast %70 : vector<8x1xf32> to vector<8x128xf32>
    %72 = arith.mulf %62, %71 : vector<8x128xf32>
    %c0_35 = arith.constant 0 : index
    %c0_36 = arith.constant 0 : index
    %73 = vector.load %arg12[%c0_35, %c0_36] : memref<1x128xf32, #tpu.memory_space<vmem>>, vector<1x128xf32>
    %74 = vector.broadcast %73 : vector<1x128xf32> to vector<8x128xf32>
    %75 = arith.mulf %72, %74 : vector<8x128xf32>
    %c0_37 = arith.constant 0 : index
    %c0_38 = arith.constant 0 : index
    %76 = vector.load %arg13[%c0_37, %c0_38] : memref<1x128xf32, #tpu.memory_space<vmem>>, vector<1x128xf32>
    %77 = vector.broadcast %76 : vector<1x128xf32> to vector<8x128xf32>
    %78 = arith.addf %75, %77 : vector<8x128xf32>
    %c0_39 = arith.constant 0 : index
    %c0_40 = arith.constant 0 : index
    %79 = vector.load %arg14[%c0_39, %c0_40] : memref<8x128xf32, #tpu.memory_space<vmem>>, vector<8x128xf32>
    tpu.vector_store %arg14[%c0_39, %c0_40], %78 {strides = array<i32>} : memref<8x128xf32, #tpu.memory_space<vmem>>, vector<8x128xf32>,
    return
  }
  func.func @transform_0(%arg0: i32) -> (i32, i32) {
    %c0_i32 = arith.constant 0 : i32
    %c0_i32_0 = arith.constant 0 : i32
    return %arg0, %c0_i32 : i32, i32
  }
  func.func @transform_1(%arg0: i32) -> (i32, i32) {
    %c0_i32 = arith.constant 0 : i32
    %c0_i32_0 = arith.constant 0 : i32
    return %arg0, %c0_i32 : i32, i32
  }
  func.func @transform_2(%arg0: i32) -> (i32, i32) {
    %c0_i32 = arith.constant 0 : i32
    %c0_i32_0 = arith.constant 0 : i32
    return %arg0, %c0_i32 : i32, i32
  }
  func.func @transform_3(%arg0: i32) -> (i32, i32) {
    %c0_i32 = arith.constant 0 : i32
    %c0_i32_0 = arith.constant 0 : i32
    %c0_i32_1 = arith.constant 0 : i32
    return %c0_i32, %c0_i32_0 : i32, i32
  }
  func.func @transform_4(%arg0: i32) -> (i32, i32) {
    %c0_i32 = arith.constant 0 : i32
    %c0_i32_0 = arith.constant 0 : i32
    %c0_i32_1 = arith.constant 0 : i32
    return %c0_i32, %c0_i32_0 : i32, i32
  }
  func.func @transform_5(%arg0: i32) -> (i32, i32) {
    %c0_i32 = arith.constant 0 : i32
    %c0_i32_0 = arith.constant 0 : i32
    %c0_i32_1 = arith.constant 0 : i32
    return %c0_i32, %c0_i32_0 : i32, i32
  }
  func.func @transform_6(%arg0: i32) -> (i32, i32) {
    %c0_i32 = arith.constant 0 : i32
    %c0_i32_0 = arith.constant 0 : i32
    %c0_i32_1 = arith.constant 0 : i32
    return %c0_i32, %c0_i32_0 : i32, i32
  }
  func.func @transform_7(%arg0: i32) -> (i32, i32) {
    %c0_i32 = arith.constant 0 : i32
    %c0_i32_0 = arith.constant 0 : i32
    %c0_i32_1 = arith.constant 0 : i32
    return %c0_i32, %c0_i32_0 : i32, i32
  }
  func.func @transform_8(%arg0: i32) -> (i32, i32) {
    %c0_i32 = arith.constant 0 : i32
    %c0_i32_0 = arith.constant 0 : i32
    %c0_i32_1 = arith.constant 0 : i32
    return %c0_i32, %c0_i32_0 : i32, i32
  }
  func.func @transform_9(%arg0: i32) -> (i32, i32) {
    %c0_i32 = arith.constant 0 : i32
    %c0_i32_0 = arith.constant 0 : i32
    %c0_i32_1 = arith.constant 0 : i32
    return %c0_i32, %c0_i32_0 : i32, i32
  }
  func.func @transform_10(%arg0: i32) -> (i32, i32) {
    %c0_i32 = arith.constant 0 : i32
    %c0_i32_0 = arith.constant 0 : i32
    %c0_i32_1 = arith.constant 0 : i32
    return %c0_i32, %c0_i32_0 : i32, i32
  }
  func.func @transform_11(%arg0: i32) -> (i32, i32) {
    %c0_i32 = arith.constant 0 : i32
    %c0_i32_0 = arith.constant 0 : i32
    %c0_i32_1 = arith.constant 0 : i32
    return %c0_i32, %c0_i32_0 : i32, i32
  }
  func.func @transform_12(%arg0: i32) -> (i32, i32) {
    %c0_i32 = arith.constant 0 : i32
    %c0_i32_0 = arith.constant 0 : i32
    %c0_i32_1 = arith.constant 0 : i32
    return %c0_i32, %c0_i32_0 : i32, i32
  }
  func.func @transform_13(%arg0: i32) -> (i32, i32) {
    %c0_i32 = arith.constant 0 : i32
    %c0_i32_0 = arith.constant 0 : i32
    return %arg0, %c0_i32 : i32, i32
  }
}

</mosaic_0001>

<llo_original>
// kernel: tpu_custom_call.1
$region0: #{tpu_custom_call.1}
  #allocation0 [shape = 'u32[]', space=smem, size = 0x4, offset = 0x4, fixed_abs, tag = 'smem constant byte address 0x4 - core index']
  #allocation1 [shape = 'u32[144,128]{1,0:T(1,128)}', space=vmem, size = 0x12000, scoped, tag = 'internal scratch']
  %s0 = inlined_call_operand.hbm [shape: f32[16,128], index: 0, kind: input, shape index: {}]
  %s1 = inlined_call_operand.hbm [shape: f32[16,128], index: 1, kind: input, shape index: {}]
  %s2 = inlined_call_operand.hbm [shape: f32[16,128], index: 2, kind: input, shape index: {}]
  %s3 = inlined_call_operand.hbm [shape: f32[128,512], index: 3, kind: input, shape index: {}]
  %s4 = inlined_call_operand.vmem [shape: f32[1,512], index: 4, kind: input, shape index: {}]
  %s5 = inlined_call_operand.hbm [shape: f32[128,512], index: 5, kind: input, shape index: {}]
  %s6 = inlined_call_operand.vmem [shape: f32[1,512], index: 6, kind: input, shape index: {}]
  %s7 = inlined_call_operand.hbm [shape: f32[128,512], index: 7, kind: input, shape index: {}]
  %s8 = inlined_call_operand.vmem [shape: f32[1,512], index: 8, kind: input, shape index: {}]
  %s9 = inlined_call_operand.hbm [shape: f32[512,128], index: 9, kind: input, shape index: {}]
  %s10 = inlined_call_operand.vmem [shape: f32[1,128], index: 10, kind: input, shape index: {}]
  %s11 = inlined_call_operand.vmem [shape: f32[1,128], index: 11, kind: input, shape index: {}]
  %s12 = inlined_call_operand.vmem [shape: f32[1,128], index: 12, kind: input, shape index: {}]
  %s13 = inlined_call_operand.hbm [shape: f32[16,128], index: 13, kind: output, shape index: {}]
  %s14 = sld [smem:[#allocation0]]
  $region113: #{tpu_custom_call.1} parent=0
    _
  %s16 = ssub.s32 1, %s14
  %s17 = scalar_select 0, %s16, %s14
  $region1: #{tpu_custom_call.1} parent=0
    #allocation2 [shape = 'u8[8192]{0}', space=vmem, size = 0x2000, scoped, tag = 'input window, operand 0']
    #allocation3 [shape = 's32[2]{0}', space=sflag, size = 0x8, scoped, tag = 'scoped memory for tpu_custom_call.1']
    #allocation4 [shape = 's32[2]{0}', space=sflag, size = 0x8, scoped, tag = 'scoped memory for tpu_custom_call.1']
    #allocation5 [shape = 'u8[8192]{0}', space=vmem, size = 0x2000, scoped, tag = 'input window, operand 1']
    #allocation6 [shape = 's32[2]{0}', space=sflag, size = 0x8, scoped, tag = 'scoped memory for tpu_custom_call.1']
    #allocation7 [shape = 'u8[8192]{0}', space=vmem, size = 0x2000, scoped, tag = 'input window, operand 2']
    #allocation8 [shape = 'u8[262144]{0}', space=vmem, size = 0x40000, scoped, tag = 'input window, operand 3, single buffered']
    #allocation9 [shape = 's32[1]{0}', space=sflag, size = 0x4, scoped, tag = 'scoped memory for tpu_custom_call.1']
    #allocation10 [shape = 'u8[262144]{0}', space=vmem, size = 0x40000, scoped, tag = 'input window, operand 5, single buffered']
    #allocation11 [shape = 'u8[262144]{0}', space=vmem, size = 0x40000, scoped, tag = 'input window, operand 7, single buffered']
    #allocation12 [shape = 's32[1]{0}', space=sflag, size = 0x4, scoped, tag = 'scoped memory for tpu_custom_call.1']
    #allocation13 [shape = 'u8[262144]{0}', space=vmem, size = 0x40000, scoped, tag = 'input window, operand 9, single buffered']
    #allocation14 [shape = 'u8[8192]{0}', space=vmem, size = 0x2000, scoped, tag = 'output window, operand 0']
    %18 = vsyncpa [#allocation3], 0
    %s19 = scalar_lea.sflag [#allocation3], 1
    %20 = vsyncpa %s19, 0
    %21 = vsyncpa [#allocation6], 0
    %s22 = scalar_lea.sflag [#allocation6], 1
    %23 = vsyncpa %s22, 0
    %24 = vsyncpa [#allocation9], 0
    %25 = vsyncpa [#allocation12], 0
    %26 = vsyncpa [#allocation4], 0
    %s27 = scalar_lea.sflag [#allocation4], 1
    %28 = vsyncpa %s27, 0
    loop: start=0, step=1, limit=4
    $region2: #{tpu_custom_call.1} parent=1 // loop_pre_header
      _
    $region3: #{tpu_custom_call.1} parent=1 // loop_header
      %s30 = sphi 0, %s34
      %p31 = scmp.ge.s32.totalorder %s30, 4
      %s40 = sphi 0, %s42
      %s43 = sphi 0, %s40
      %s44 = sphi 0, %s43
      %s60 = sphi 0, %s44
      %s66 = sphi 0, %s68
      %s69 = sphi 0, %s66
      %s70 = sphi 0, %s69
      %s86 = sphi 0, %s70
      %s92 = sphi 0, %s94
      %s95 = sphi 0, %s92
      %s96 = sphi 0, %s95
      %s112 = sphi 0, %s96
      %s116 = sphi 0, %s116
      %s118 = sphi 0, %s116
      %s119 = sphi 0, %s118
      %s133 = sphi 0, %s119
      %s137 = sphi 0, %s137
      %s139 = sphi 0, %s137
      %s140 = sphi 0, %s139
      %s154 = sphi 0, %s140
      %s158 = sphi 0, %s158
      %s160 = sphi 0, %s158
      %s161 = sphi 0, %s160
      %s175 = sphi 0, %s161
      %s179 = sphi 0, %s179
      %s181 = sphi 0, %s179
      %s182 = sphi 0, %s181
      %s196 = sphi 0, %s182
      %s200 = sphi 0, %s200
      %s202 = sphi 0, %s200
      %s203 = sphi 0, %s202
      %s217 = sphi 0, %s203
      %s221 = sphi 0, %s221
      %s223 = sphi 0, %s221
      %s224 = sphi 0, %s223
      %s238 = sphi 0, %s224
      %s242 = sphi 0, %s242
      %s244 = sphi 0, %s242
      %s245 = sphi 0, %s244
      %s259 = sphi 0, %s245
      %s263 = sphi 0, %s263
      %s265 = sphi 0, %s263
      %s266 = sphi 0, %s265
      %s280 = sphi 0, %s266
      %s284 = sphi 0, %s284
      %s286 = sphi 0, %s284
      %s287 = sphi 0, %s286
      %s301 = sphi 0, %s287
      %s305 = sphi 0, %s305
      %s307 = sphi 0, %s305
      %s308 = sphi 0, %s307
      %s322 = sphi 0, %s308
      %s328 = sphi 0, %s330
      %s331 = sphi 0, %s328
      %s332 = sphi 0, %s331
      %s348 = sphi 0, %s332
    $region4: #{tpu_custom_call.1} parent=1 // loop_header_branch
      %33 = sbr.rel (%p31) target = $region8
    $region5: #{tpu_custom_call.1} parent=1 // loop_body
      %s35 = ssub.s32 %s30, 1
      %s36 = ssub.s32 %s30, 2
      %s37 = sadd.s32 %s30, 1
      %s38 = ssub.s32 %s30, %s37
      %p39 = scmp.eq.s32.totalorder %s38, 0
      %s41 = sadd.s32 %s40, 1
      %s42 = scalar_select %p39, %s40, %s41
      %p45 = pneg %p39
      %p46 = scmp.eq.s32.totalorder %s30, 1
      %p47 = por %p45, %p46
      %p48 = scmp.ne.s32.totalorder %s40, %s43
      %p49 = scmp.eq.s32.totalorder %s30, 0
      %p50 = por %p48, %p49
      %p51 = scmp.ne.s32.totalorder %s40, %s43
      %p52 = scmp.eq.s32.totalorder %s35, 1
      %p53 = por %p51, %p52
      %p54 = scmp.ne.s32.totalorder %s43, %s44
      %p55 = scmp.eq.s32.totalorder %s35, 0
      %p56 = por %p54, %p55
      %p57 = scmp.ne.s32.totalorder %s43, %s44
      %p58 = scmp.eq.s32.totalorder %s36, 1
      %p59 = por %p57, %p58
      %p61 = scmp.ne.s32.totalorder %s44, %s60
      %p62 = scmp.eq.s32.totalorder %s36, 0
      %p63 = por %p61, %p62
      %s64 = ssub.s32 %s30, %s37
      %p65 = scmp.eq.s32.totalorder %s64, 0
      %s67 = sadd.s32 %s66, 1
      %s68 = scalar_select %p65, %s66, %s67
      %p71 = pneg %p65
      %p72 = scmp.eq.s32.totalorder %s30, 1
      %p73 = por %p71, %p72
      %p74 = scmp.ne.s32.totalorder %s66, %s69
      %p75 = scmp.eq.s32.totalorder %s30, 0
      %p76 = por %p74, %p75
      %p77 = scmp.ne.s32.totalorder %s66, %s69
      %p78 = scmp.eq.s32.totalorder %s35, 1
      %p79 = por %p77, %p78
      %p80 = scmp.ne.s32.totalorder %s69, %s70
      %p81 = scmp.eq.s32.totalorder %s35, 0
      %p82 = por %p80, %p81
      %p83 = scmp.ne.s32.totalorder %s69, %s70
      %p84 = scmp.eq.s32.totalorder %s36, 1
      %p85 = por %p83, %p84
      %p87 = scmp.ne.s32.totalorder %s70, %s86
      %p88 = scmp.eq.s32.totalorder %s36, 0
      %p89 = por %p87, %p88
      %s90 = ssub.s32 %s30, %s37
      %p91 = scmp.eq.s32.totalorder %s90, 0
      %s93 = sadd.s32 %s92, 1
      %s94 = scalar_select %p91, %s92, %s93
      %p97 = pneg %p91
      %p98 = scmp.eq.s32.totalorder %s30, 1
      %p99 = por %p97, %p98
      %p100 = scmp.ne.s32.totalorder %s92, %s95
      %p101 = scmp.eq.s32.totalorder %s30, 0
      %p102 = por %p100, %p101
      %p103 = scmp.ne.s32.totalorder %s92, %s95
      %p104 = scmp.eq.s32.totalorder %s35, 1
      %p105 = por %p103, %p104
      %p106 = scmp.ne.s32.totalorder %s95, %s96
      %p107 = scmp.eq.s32.totalorder %s35, 0
      %p108 = por %p106, %p107
      %p109 = scmp.ne.s32.totalorder %s95, %s96
      %p110 = scmp.eq.s32.totalorder %s36, 1
      %p111 = por %p109, %p110
      %p113 = scmp.ne.s32.totalorder %s96, %s112
      %p114 = scmp.eq.s32.totalorder %s36, 0
      %p115 = por %p113, %p114
      %s117 = sadd.s32 %s116, 1
      %p120 = scmp.eq.s32.totalorder %s30, 1
      %p121 = scmp.ne.s32.totalorder %s116, %s118
      %p122 = scmp.eq.s32.totalorder %s30, 0
      %p123 = por %p121, %p122
      %p124 = scmp.ne.s32.totalorder %s116, %s118
      %p125 = scmp.eq.s32.totalorder %s35, 1
      %p126 = por %p124, %p125
      %p127 = scmp.ne.s32.totalorder %s118, %s119
      %p128 = scmp.eq.s32.totalorder %s35, 0
      %p129 = por %p127, %p128
      %p130 = scmp.ne.s32.totalorder %s118, %s119
      %p131 = scmp.eq.s32.totalorder %s36, 1
      %p132 = por %p130, %p131
      %p134 = scmp.ne.s32.totalorder %s119, %s133
      %p135 = scmp.eq.s32.totalorder %s36, 0
      %p136 = por %p134, %p135
      %s138 = sadd.s32 %s137, 1
      %p141 = scmp.eq.s32.totalorder %s30, 1
      %p142 = scmp.ne.s32.totalorder %s137, %s139
      %p143 = scmp.eq.s32.totalorder %s30, 0
      %p144 = por %p142, %p143
      %p145 = scmp.ne.s32.totalorder %s137, %s139
      %p146 = scmp.eq.s32.totalorder %s35, 1
      %p147 = por %p145, %p146
      %p148 = scmp.ne.s32.totalorder %s139, %s140
      %p149 = scmp.eq.s32.totalorder %s35, 0
      %p150 = por %p148, %p149
      %p151 = scmp.ne.s32.totalorder %s139, %s140
      %p152 = scmp.eq.s32.totalorder %s36, 1
      %p153 = por %p151, %p152
      %p155 = scmp.ne.s32.totalorder %s140, %s154
      %p156 = scmp.eq.s32.totalorder %s36, 0
      %p157 = por %p155, %p156
      %s159 = sadd.s32 %s158, 1
      %p162 = scmp.eq.s32.totalorder %s30, 1
      %p163 = scmp.ne.s32.totalorder %s158, %s160
      %p164 = scmp.eq.s32.totalorder %s30, 0
      %p165 = por %p163, %p164
      %p166 = scmp.ne.s32.totalorder %s158, %s160
      %p167 = scmp.eq.s32.totalorder %s35, 1
      %p168 = por %p166, %p167
      %p169 = scmp.ne.s32.totalorder %s160, %s161
      %p170 = scmp.eq.s32.totalorder %s35, 0
      %p171 = por %p169, %p170
      %p172 = scmp.ne.s32.totalorder %s160, %s161
      %p173 = scmp.eq.s32.totalorder %s36, 1
      %p174 = por %p172, %p173
      %p176 = scmp.ne.s32.totalorder %s161, %s175
      %p177 = scmp.eq.s32.totalorder %s36, 0
      %p178 = por %p176, %p177
      %s180 = sadd.s32 %s179, 1
      %p183 = scmp.eq.s32.totalorder %s30, 1
      %p184 = scmp.ne.s32.totalorder %s179, %s181
      %p185 = scmp.eq.s32.totalorder %s30, 0
      %p186 = por %p184, %p185
      %p187 = scmp.ne.s32.totalorder %s179, %s181
      %p188 = scmp.eq.s32.totalorder %s35, 1
      %p189 = por %p187, %p188
      %p190 = scmp.ne.s32.totalorder %s181, %s182
      %p191 = scmp.eq.s32.totalorder %s35, 0
      %p192 = por %p190, %p191
      %p193 = scmp.ne.s32.totalorder %s181, %s182
      %p194 = scmp.eq.s32.totalorder %s36, 1
      %p195 = por %p193, %p194
      %p197 = scmp.ne.s32.totalorder %s182, %s196
      %p198 = scmp.eq.s32.totalorder %s36, 0
      %p199 = por %p197, %p198
      %s201 = sadd.s32 %s200, 1
      %p204 = scmp.eq.s32.totalorder %s30, 1
      %p205 = scmp.ne.s32.totalorder %s200, %s202
      %p206 = scmp.eq.s32.totalorder %s30, 0
      %p207 = por %p205, %p206
      %p208 = scmp.ne.s32.totalorder %s200, %s202
      %p209 = scmp.eq.s32.totalorder %s35, 1
      %p210 = por %p208, %p209
      %p211 = scmp.ne.s32.totalorder %s202, %s203
      %p212 = scmp.eq.s32.totalorder %s35, 0
      %p213 = por %p211, %p212
      %p214 = scmp.ne.s32.totalorder %s202, %s203
      %p215 = scmp.eq.s32.totalorder %s36, 1
      %p216 = por %p214, %p215
      %p218 = scmp.ne.s32.totalorder %s203, %s217
      %p219 = scmp.eq.s32.totalorder %s36, 0
      %p220 = por %p218, %p219
      %s222 = sadd.s32 %s221, 1
      %p225 = scmp.eq.s32.totalorder %s30, 1
      %p226 = scmp.ne.s32.totalorder %s221, %s223
      %p227 = scmp.eq.s32.totalorder %s30, 0
      %p228 = por %p226, %p227
      %p229 = scmp.ne.s32.totalorder %s221, %s223
      %p230 = scmp.eq.s32.totalorder %s35, 1
      %p231 = por %p229, %p230
      %p232 = scmp.ne.s32.totalorder %s223, %s224
      %p233 = scmp.eq.s32.totalorder %s35, 0
      %p234 = por %p232, %p233
      %p235 = scmp.ne.s32.totalorder %s223, %s224
      %p236 = scmp.eq.s32.totalorder %s36, 1
      %p237 = por %p235, %p236
      %p239 = scmp.ne.s32.totalorder %s224, %s238
      %p240 = scmp.eq.s32.totalorder %s36, 0
      %p241 = por %p239, %p240
      %s243 = sadd.s32 %s242, 1
      %p246 = scmp.eq.s32.totalorder %s30, 1
      %p247 = scmp.ne.s32.totalorder %s242, %s244
      %p248 = scmp.eq.s32.totalorder %s30, 0
      %p249 = por %p247, %p248
      %p250 = scmp.ne.s32.totalorder %s242, %s244
      %p251 = scmp.eq.s32.totalorder %s35, 1
      %p252 = por %p250, %p251
      %p253 = scmp.ne.s32.totalorder %s244, %s245
      %p254 = scmp.eq.s32.totalorder %s35, 0
      %p255 = por %p253, %p254
      %p256 = scmp.ne.s32.totalorder %s244, %s245
      %p257 = scmp.eq.s32.totalorder %s36, 1
      %p258 = por %p256, %p257
      %p260 = scmp.ne.s32.totalorder %s245, %s259
      %p261 = scmp.eq.s32.totalorder %s36, 0
      %p262 = por %p260, %p261
      %s264 = sadd.s32 %s263, 1
      %p267 = scmp.eq.s32.totalorder %s30, 1
      %p268 = scmp.ne.s32.totalorder %s263, %s265
      %p269 = scmp.eq.s32.totalorder %s30, 0
      %p270 = por %p268, %p269
      %p271 = scmp.ne.s32.totalorder %s263, %s265
      %p272 = scmp.eq.s32.totalorder %s35, 1
      %p273 = por %p271, %p272
      %p274 = scmp.ne.s32.totalorder %s265, %s266
      %p275 = scmp.eq.s32.totalorder %s35, 0
      %p276 = por %p274, %p275
      %p277 = scmp.ne.s32.totalorder %s265, %s266
      %p278 = scmp.eq.s32.totalorder %s36, 1
      %p279 = por %p277, %p278
      %p281 = scmp.ne.s32.totalorder %s266, %s280
      %p282 = scmp.eq.s32.totalorder %s36, 0
      %p283 = por %p281, %p282
      %s285 = sadd.s32 %s284, 1
      %p288 = scmp.eq.s32.totalorder %s30, 1
      %p289 = scmp.ne.s32.totalorder %s284, %s286
      %p290 = scmp.eq.s32.totalorder %s30, 0
      %p291 = por %p289, %p290
      %p292 = scmp.ne.s32.totalorder %s284, %s286
      %p293 = scmp.eq.s32.totalorder %s35, 1
      %p294 = por %p292, %p293
      %p295 = scmp.ne.s32.totalorder %s286, %s287
      %p296 = scmp.eq.s32.totalorder %s35, 0
      %p297 = por %p295, %p296
      %p298 = scmp.ne.s32.totalorder %s286, %s287
      %p299 = scmp.eq.s32.totalorder %s36, 1
      %p300 = por %p298, %p299
      %p302 = scmp.ne.s32.totalorder %s287, %s301
      %p303 = scmp.eq.s32.totalorder %s36, 0
      %p304 = por %p302, %p303
      %s306 = sadd.s32 %s305, 1
      %p309 = scmp.eq.s32.totalorder %s30, 1
      %p310 = scmp.ne.s32.totalorder %s305, %s307
      %p311 = scmp.eq.s32.totalorder %s30, 0
      %p312 = por %p310, %p311
      %p313 = scmp.ne.s32.totalorder %s305, %s307
      %p314 = scmp.eq.s32.totalorder %s35, 1
      %p315 = por %p313, %p314
      %p316 = scmp.ne.s32.totalorder %s307, %s308
      %p317 = scmp.eq.s32.totalorder %s35, 0
      %p318 = por %p316, %p317
      %p319 = scmp.ne.s32.totalorder %s307, %s308
      %p320 = scmp.eq.s32.totalorder %s36, 1
      %p321 = por %p319, %p320
      %p323 = scmp.ne.s32.totalorder %s308, %s322
      %p324 = scmp.eq.s32.totalorder %s36, 0
      %p325 = por %p323, %p324
      %s326 = ssub.s32 %s30, %s37
      %p327 = scmp.eq.s32.totalorder %s326, 0
      %s329 = sadd.s32 %s328, 1
      %s330 = scalar_select %p327, %s328, %s329
      %p333 = pneg %p327
      %p334 = scmp.eq.s32.totalorder %s30, 1
      %p335 = por %p333, %p334
      %p336 = scmp.ne.s32.totalorder %s328, %s331
      %p337 = scmp.eq.s32.totalorder %s30, 0
      %p338 = por %p336, %p337
      %p339 = scmp.ne.s32.totalorder %s328, %s331
      %p340 = scmp.eq.s32.totalorder %s35, 1
      %p341 = por %p339, %p340
      %p342 = scmp.ne.s32.totalorder %s331, %s332
      %p343 = scmp.eq.s32.totalorder %s35, 0
      %p344 = por %p342, %p343
      %p345 = scmp.ne.s32.totalorder %s331, %s332
      %p346 = scmp.eq.s32.totalorder %s36, 1
      %p347 = por %p345, %p346
      %p349 = scmp.ne.s32.totalorder %s332, %s348
      %p350 = scmp.eq.s32.totalorder %s36, 0
      %p351 = por %p349, %p350
      %p352 = scmp.le.s32.totalorder 1, %s30
      %p353 = scmp.lt.s32.totalorder %s30, 3
      %p354 = pnand %p352, %p353
      %p355 = pneg %p354
      // Predicated region
      $region9: #{tpu_custom_call.1} parent=5 // pred_check
        _
      $region10: #{tpu_custom_call.1} parent=5 // pred_check_branch
        %357 = sbr.rel (%p354) target = $region12
      $region11: #{tpu_custom_call.1} parent=5 // pred_region
        %s358 = ssub.s32 %s30, 1
        // Predicated region
        $region13: #{tpu_custom_call.1} parent=11 // pred_check
          %p359 = pneg %p129
        $region14: #{tpu_custom_call.1} parent=11 // pred_check_branch
          %361 = sbr.rel (%p359) target = $region16
        $region15: #{tpu_custom_call.1} parent=11 // pred_region
          %s363 = ssub.s32 8192, 8192
          %364 = vsyncadd [#allocation9], %s363
          %s365 = sshll.u32 [#allocation8], 4
          %s366 = int_to_ptr.vmem [resolvable:$true] %s365
          %371 = dma.hbm_to_vmem [thread:$0]  %s3, 8192, %s366, [#allocation9], 512, 512, 32
        $region16: #{tpu_custom_call.1} parent=11 // pred_fallthru
          _
        // Predicated region
        $region17: #{tpu_custom_call.1} parent=11 // pred_check
          %p372 = pneg %p150
        $region18: #{tpu_custom_call.1} parent=11 // pred_check_branch
          %374 = sbr.rel (%p372) target = $region20
        $region19: #{tpu_custom_call.1} parent=11 // pred_region
          _
        $region20: #{tpu_custom_call.1} parent=11 // pred_fallthru
          _
        // Predicated region
        $region21: #{tpu_custom_call.1} parent=11 // pred_check
          %p375 = pneg %p171
        $region22: #{tpu_custom_call.1} parent=11 // pred_check_branch
          %377 = sbr.rel (%p375) target = $region24
        $region23: #{tpu_custom_call.1} parent=11 // pred_region
          %s379 = ssub.s32 8192, 8192
          %380 = vsyncadd [#allocation9], %s379
          %s381 = sshll.u32 [#allocation10], 4
          %s382 = int_to_ptr.vmem [resolvable:$true] %s381
          %387 = dma.hbm_to_vmem [thread:$0]  %s5, 8192, %s382, [#allocation9], 512, 512, 32
        $region24: #{tpu_custom_call.1} parent=11 // pred_fallthru
          _
        // Predicated region
        $region25: #{tpu_custom_call.1} parent=11 // pred_check
          %p388 = pneg %p192
        $region26: #{tpu_custom_call.1} parent=11 // pred_check_branch
          %390 = sbr.rel (%p388) target = $region28
        $region27: #{tpu_custom_call.1} parent=11 // pred_region
          _
        $region28: #{tpu_custom_call.1} parent=11 // pred_fallthru
          _
        // Predicated region
        $region29: #{tpu_custom_call.1} parent=11 // pred_check
          %p391 = pneg %p213
        $region30: #{tpu_custom_call.1} parent=11 // pred_check_branch
          %393 = sbr.rel (%p391) target = $region32
        $region31: #{tpu_custom_call.1} parent=11 // pred_region
          %s395 = ssub.s32 8192, 8192
          %396 = vsyncadd [#allocation12], %s395
          %s397 = sshll.u32 [#allocation11], 4
          %s398 = int_to_ptr.vmem [resolvable:$true] %s397
          %403 = dma.hbm_to_vmem [thread:$0]  %s7, 8192, %s398, [#allocation12], 512, 512, 32
        $region32: #{tpu_custom_call.1} parent=11 // pred_fallthru
          _
        // Predicated region
        $region33: #{tpu_custom_call.1} parent=11 // pred_check
          %p404 = pneg %p234
        $region34: #{tpu_custom_call.1} parent=11 // pred_check_branch
          %406 = sbr.rel (%p404) target = $region36
        $region35: #{tpu_custom_call.1} parent=11 // pred_region
          _
        $region36: #{tpu_custom_call.1} parent=11 // pred_fallthru
          _
        // Predicated region
        $region37: #{tpu_custom_call.1} parent=11 // pred_check
          %p407 = pneg %p255
        $region38: #{tpu_custom_call.1} parent=11 // pred_check_branch
          %409 = sbr.rel (%p407) target = $region40
        $region39: #{tpu_custom_call.1} parent=11 // pred_region
          %s411 = ssub.s32 8192, 8192
          %412 = vsyncadd [#allocation12], %s411
          %s413 = sshll.u32 [#allocation13], 4
          %s414 = int_to_ptr.vmem [resolvable:$true] %s413
          %419 = dma.hbm_to_vmem [thread:$0]  %s9, 8192, %s414, [#allocation12], 128, 128, 8
        $region40: #{tpu_custom_call.1} parent=11 // pred_fallthru
          _
        // Predicated region
        $region41: #{tpu_custom_call.1} parent=11 // pred_check
          %p420 = pneg %p276
        $region42: #{tpu_custom_call.1} parent=11 // pred_check_branch
          %422 = sbr.rel (%p420) target = $region44
        $region43: #{tpu_custom_call.1} parent=11 // pred_region
          _
        $region44: #{tpu_custom_call.1} parent=11 // pred_fallthru
          _
        // Predicated region
        $region45: #{tpu_custom_call.1} parent=11 // pred_check
          %p423 = pneg %p297
        $region46: #{tpu_custom_call.1} parent=11 // pred_check_branch
          %425 = sbr.rel (%p423) target = $region48
        $region47: #{tpu_custom_call.1} parent=11 // pred_region
          _
        $region48: #{tpu_custom_call.1} parent=11 // pred_fallthru
          _
        // Predicated region
        $region49: #{tpu_custom_call.1} parent=11 // pred_check
          %p426 = pneg %p318
        $region50: #{tpu_custom_call.1} parent=11 // pred_check_branch
          %428 = sbr.rel (%p426) target = $region52
        $region51: #{tpu_custom_call.1} parent=11 // pred_region
          _
        $region52: #{tpu_custom_call.1} parent=11 // pred_fallthru
          _
      $region12: #{tpu_custom_call.1} parent=5 // pred_fallthru
        _
      %p429 = scmp.lt.s32.totalorder %s30, 2
      // Predicated region
      $region53: #{tpu_custom_call.1} parent=5 // pred_check
        %p430 = pneg %p429
      $region54: #{tpu_custom_call.1} parent=5 // pred_check_branch
        %432 = sbr.rel (%p430) target = $region56
      $region55: #{tpu_custom_call.1} parent=5 // pred_region
        // Predicated region
        $region57: #{tpu_custom_call.1} parent=55 // pred_check
          %p433 = pneg %p50
        $region58: #{tpu_custom_call.1} parent=55 // pred_check_branch
          %435 = sbr.rel (%p433) target = $region60
        $region59: #{tpu_custom_call.1} parent=55 // pred_region
          %s436 = sand.u32 %s40, 1
          %s437 = scalar_lea.sflag [#allocation3], %s436
          %s438 = sand.u32 %s40, 1
          %s439 = smul.addr %s438, 8
          %s440 = scalar_lea.vmem [#allocation2], %s439
          %s442 = ssub.s32 128, 128
          %443 = vsyncadd %s437, %s442
          %s444 = smul.addr %s30, 128
          %s445 = scalar_lea.hbm %s0, %s444
          %s447 = sshll.u32 %s440, 4
          %s448 = int_to_ptr.vmem [resolvable:$true] %s447
          %450 = dma.hbm_to_vmem [thread:$0]  %s445, 128, %s448, %s437
        $region60: #{tpu_custom_call.1} parent=55 // pred_fallthru
          _
        // Predicated region
        $region61: #{tpu_custom_call.1} parent=55 // pred_check
          %p451 = pneg %p76
        $region62: #{tpu_custom_call.1} parent=55 // pred_check_branch
          %453 = sbr.rel (%p451) target = $region64
        $region63: #{tpu_custom_call.1} parent=55 // pred_region
          %s454 = sand.u32 %s30, 1
          %s455 = scalar_lea.sflag [#allocation6], %s454
          %s456 = sand.u32 %s66, 1
          %s457 = smul.addr %s456, 8
          %s458 = scalar_lea.vmem [#allocation5], %s457
          %s460 = ssub.s32 128, 128
          %461 = vsyncadd %s455, %s460
          %s462 = smul.addr %s30, 128
          %s463 = scalar_lea.hbm %s1, %s462
          %s465 = sshll.u32 %s458, 4
          %s466 = int_to_ptr.vmem [resolvable:$true] %s465
          %468 = dma.hbm_to_vmem [thread:$0]  %s463, 128, %s466, %s455
        $region64: #{tpu_custom_call.1} parent=55 // pred_fallthru
          _
        // Predicated region
        $region65: #{tpu_custom_call.1} parent=55 // pred_check
          %p469 = pneg %p102
        $region66: #{tpu_custom_call.1} parent=55 // pred_check_branch
          %471 = sbr.rel (%p469) target = $region68
        $region67: #{tpu_custom_call.1} parent=55 // pred_region
          %s472 = sand.u32 %s30, 1
          %s473 = scalar_lea.sflag [#allocation6], %s472
          %s474 = sand.u32 %s92, 1
          %s475 = smul.addr %s474, 8
          %s476 = scalar_lea.vmem [#allocation7], %s475
          %s478 = ssub.s32 128, 128
          %479 = vsyncadd %s473, %s478
          %s480 = smul.addr %s30, 128
          %s481 = scalar_lea.hbm %s2, %s480
          %s483 = sshll.u32 %s476, 4
          %s484 = int_to_ptr.vmem [resolvable:$true] %s483
          %486 = dma.hbm_to_vmem [thread:$0]  %s481, 128, %s484, %s473
        $region68: #{tpu_custom_call.1} parent=55 // pred_fallthru
          _
      $region56: #{tpu_custom_call.1} parent=5 // pred_fallthru
        _
      %p487 = scmp.le.s32.totalorder 1, %s30
      %p488 = scmp.lt.s32.totalorder %s30, 3
      %p489 = pnand %p487, %p488
      %p490 = pneg %p489
      // Predicated region
      $region69: #{tpu_custom_call.1} parent=5 // pred_check
        _
      $region70: #{tpu_custom_call.1} parent=5 // pred_check_branch
        %492 = sbr.rel (%p489) target = $region72
      $region71: #{tpu_custom_call.1} parent=5 // pred_region
        %s493 = ssub.s32 %s30, 1
        %s494 = sand.u32 %s43, 1
        %s495 = scalar_lea.sflag [#allocation3], %s494
        %s496 = sand.u32 %s43, 1
        %s497 = smul.addr %s496, 8
        %s498 = scalar_lea.vmem [#allocation2], %s497
        // Predicated region
        $region73: #{tpu_custom_call.1} parent=71 // pred_check
          %p499 = pneg %p56
        $region74: #{tpu_custom_call.1} parent=71 // pred_check_branch
          %501 = sbr.rel (%p499) target = $region76
        $region75: #{tpu_custom_call.1} parent=71 // pred_region
          %502 = dma.done %s495, 128
        $region76: #{tpu_custom_call.1} parent=71 // pred_fallthru
          _
        %s503 = sand.u32 %s35, 1
        %s504 = scalar_lea.sflag [#allocation6], %s503
        %s505 = sand.u32 %s69, 1
        %s506 = smul.addr %s505, 8
        %s507 = scalar_lea.vmem [#allocation5], %s506
        // Predicated region
        $region77: #{tpu_custom_call.1} parent=71 // pred_check
          %p508 = pneg %p82
        $region78: #{tpu_custom_call.1} parent=71 // pred_check_branch
          %510 = sbr.rel (%p508) target = $region80
        $region79: #{tpu_custom_call.1} parent=71 // pred_region
          %511 = dma.done %s504, 128
        $region80: #{tpu_custom_call.1} parent=71 // pred_fallthru
          _
        %s512 = sand.u32 %s35, 1
        %s513 = scalar_lea.sflag [#allocation6], %s512
        %s514 = sand.u32 %s95, 1
        %s515 = smul.addr %s514, 8
        %s516 = scalar_lea.vmem [#allocation7], %s515
        // Predicated region
        $region81: #{tpu_custom_call.1} parent=71 // pred_check
          %p517 = pneg %p108
        $region82: #{tpu_custom_call.1} parent=71 // pred_check_branch
          %519 = sbr.rel (%p517) target = $region84
        $region83: #{tpu_custom_call.1} parent=71 // pred_region
          %520 = dma.done %s513, 128
        $region84: #{tpu_custom_call.1} parent=71 // pred_fallthru
          _
        // Predicated region
        $region85: #{tpu_custom_call.1} parent=71 // pred_check
          %p521 = pneg %p129
        $region86: #{tpu_custom_call.1} parent=71 // pred_check_branch
          %523 = sbr.rel (%p521) target = $region88
        $region87: #{tpu_custom_call.1} parent=71 // pred_region
          %524 = dma.done [#allocation9], 8192
        $region88: #{tpu_custom_call.1} parent=71 // pred_fallthru
          _
        // Predicated region
        $region89: #{tpu_custom_call.1} parent=71 // pred_check
          %p525 = pneg %p171
        $region90: #{tpu_custom_call.1} parent=71 // pred_check_branch
          %527 = sbr.rel (%p525) target = $region92
        $region91: #{tpu_custom_call.1} parent=71 // pred_region
          %528 = dma.done [#allocation9], 8192
        $region92: #{tpu_custom_call.1} parent=71 // pred_fallthru
          _
        // Predicated region
        $region93: #{tpu_custom_call.1} parent=71 // pred_check
          %p529 = pneg %p213
        $region94: #{tpu_custom_call.1} parent=71 // pred_check_branch
          %531 = sbr.rel (%p529) target = $region96
        $region95: #{tpu_custom_call.1} parent=71 // pred_region
          %532 = dma.done [#allocation12], 8192
        $region96: #{tpu_custom_call.1} parent=71 // pred_fallthru
          _
        // Predicated region
        $region97: #{tpu_custom_call.1} parent=71 // pred_check
          %p533 = pneg %p255
        $region98: #{tpu_custom_call.1} parent=71 // pred_check_branch
          %535 = sbr.rel (%p533) target = $region100
        $region99: #{tpu_custom_call.1} parent=71 // pred_region
          %536 = dma.done [#allocation12], 8192
        $region100: #{tpu_custom_call.1} parent=71 // pred_fallthru
          _
        %s537 = sand.u32 %s43, 1
        %s538 = scalar_lea.sflag [#allocation3], %s537
        %s539 = sand.u32 %s43, 1
        %s540 = smul.addr %s539, 8
        %s541 = scalar_lea.vmem [#allocation2], %s540
        %p542 = pneg %p56
        %p543 = pneg %p53
        %s544 = sand.u32 %s35, 1
        %s545 = scalar_lea.sflag [#allocation6], %s544
        %s546 = sand.u32 %s69, 1
        %s547 = smul.addr %s546, 8
        %s548 = scalar_lea.vmem [#allocation5], %s547
        %p549 = pneg %p82
        %p550 = pneg %p79
        %s551 = sand.u32 %s35, 1
        %s552 = scalar_lea.sflag [#allocation6], %s551
        %s553 = sand.u32 %s95, 1
        %s554 = smul.addr %s553, 8
        %s555 = scalar_lea.vmem [#allocation7], %s554
        %p556 = pneg %p108
        %p557 = pneg %p105
        %p558 = pneg %p129
        %p559 = pneg %p126
        %p560 = pneg %p150
        %p561 = pneg %p147
        %p562 = pneg %p171
        %p563 = pneg %p168
        %p564 = pneg %p192
        %p565 = pneg %p189
        %p566 = pneg %p213
        %p567 = pneg %p210
        %p568 = pneg %p234
        %p569 = pneg %p231
        %p570 = pneg %p255
        %p571 = pneg %p252
        %p572 = pneg %p276
        %p573 = pneg %p273
        %p574 = pneg %p297
        %p575 = pneg %p294
        %p576 = pneg %p318
        %p577 = pneg %p315
        %p578 = pneg %p344
        %p579 = pneg %p341
        %s580 = sand.u32 %s331, 1
        %s581 = scalar_lea.sflag [#allocation4], %s580
        %s582 = sand.u32 %s331, 1
        %s583 = smul.addr %s582, 8
        %s584 = scalar_lea.vmem [#allocation14], %s583
        %v585 = vld [vmem:[%s498] sm:$0xff]
        %v586 = vld [vmem:[%s507] sm:$0xff]
        %v587 = vld [vmem:[%s516] sm:$0xff]
        %v588 = vld [vmem:[#allocation8] sm:$0xff]
        %v589 = vld [vmem:[#allocation8 + $0x8] sm:$0xff]
        %v590 = vld [vmem:[#allocation8 + $0x10] sm:$0xff]
        %v591 = vld [vmem:[#allocation8 + $0x18] sm:$0xff]
        %v592 = vld [vmem:[#allocation8 + $0x20] sm:$0xff]
        %v593 = vld [vmem:[#allocation8 + $0x28] sm:$0xff]
        %v594 = vld [vmem:[#allocation8 + $0x30] sm:$0xff]
        %v595 = vld [vmem:[#allocation8 + $0x38] sm:$0xff]
        %v596 = vld [vmem:[#allocation8 + $0x40] sm:$0xff]
        %v597 = vld [vmem:[#allocation8 + $0x48] sm:$0xff]
        %v598 = vld [vmem:[#allocation8 + $0x50] sm:$0xff]
        %v599 = vld [vmem:[#allocation8 + $0x58] sm:$0xff]
        %v600 = vld [vmem:[#allocation8 + $0x60] sm:$0xff]
        %v601 = vld [vmem:[#allocation8 + $0x68] sm:$0xff]
        %v602 = vld [vmem:[#allocation8 + $0x70] sm:$0xff]
        %v603 = vld [vmem:[#allocation8 + $0x78] sm:$0xff]
        %v604 = vld [vmem:[#allocation8 + $0x80] sm:$0xff]
        %v605 = vld [vmem:[#allocation8 + $0x88] sm:$0xff]
        %v606 = vld [vmem:[#allocation8 + $0x90] sm:$0xff]
        %v607 = vld [vmem:[#allocation8 + $0x98] sm:$0xff]
        %v608 = vld [vmem:[#allocation8 + $0xa0] sm:$0xff]
        %v609 = vld [vmem:[#allocation8 + $0xa8] sm:$0xff]
        %v610 = vld [vmem:[#allocation8 + $0xb0] sm:$0xff]
        %v611 = vld [vmem:[#allocation8 + $0xb8] sm:$0xff]
        %v612 = vld [vmem:[#allocation8 + $0xc0] sm:$0xff]
        %v613 = vld [vmem:[#allocation8 + $0xc8] sm:$0xff]
        %v614 = vld [vmem:[#allocation8 + $0xd0] sm:$0xff]
        %v615 = vld [vmem:[#allocation8 + $0xd8] sm:$0xff]
        %v616 = vld [vmem:[#allocation8 + $0xe0] sm:$0xff]
        %v617 = vld [vmem:[#allocation8 + $0xe8] sm:$0xff]
        %v618 = vld [vmem:[#allocation8 + $0xf0] sm:$0xff]
        %v619 = vld [vmem:[#allocation8 + $0xf8] sm:$0xff]
        %v620 = vld [vmem:[#allocation8 + $0x100] sm:$0xff]
        %v621 = vld [vmem:[#allocation8 + $0x108] sm:$0xff]
        %v622 = vld [vmem:[#allocation8 + $0x110] sm:$0xff]
        %v623 = vld [vmem:[#allocation8 + $0x118] sm:$0xff]
        %v624 = vld [vmem:[#allocation8 + $0x120] sm:$0xff]
        %v625 = vld [vmem:[#allocation8 + $0x128] sm:$0xff]
        %v626 = vld [vmem:[#allocation8 + $0x130] sm:$0xff]
        %v627 = vld [vmem:[#allocation8 + $0x138] sm:$0xff]
        %v628 = vld [vmem:[#allocation8 + $0x140] sm:$0xff]
        %v629 = vld [vmem:[#allocation8 + $0x148] sm:$0xff]
        %v630 = vld [vmem:[#allocation8 + $0x150] sm:$0xff]
        %v631 = vld [vmem:[#allocation8 + $0x158] sm:$0xff]
        %v632 = vld [vmem:[#allocation8 + $0x160] sm:$0xff]
        %v633 = vld [vmem:[#allocation8 + $0x168] sm:$0xff]
        %v634 = vld [vmem:[#allocation8 + $0x170] sm:$0xff]
        %v635 = vld [vmem:[#allocation8 + $0x178] sm:$0xff]
        %v636 = vld [vmem:[#allocation8 + $0x180] sm:$0xff]
        %v637 = vld [vmem:[#allocation8 + $0x188] sm:$0xff]
        %v638 = vld [vmem:[#allocation8 + $0x190] sm:$0xff]
        %v639 = vld [vmem:[#allocation8 + $0x198] sm:$0xff]
        %v640 = vld [vmem:[#allocation8 + $0x1a0] sm:$0xff]
        %v641 = vld [vmem:[#allocation8 + $0x1a8] sm:$0xff]
        %v642 = vld [vmem:[#allocation8 + $0x1b0] sm:$0xff]
        %v643 = vld [vmem:[#allocation8 + $0x1b8] sm:$0xff]
        %v644 = vld [vmem:[#allocation8 + $0x1c0] sm:$0xff]
        %v645 = vld [vmem:[#allocation8 + $0x1c8] sm:$0xff]
        %v646 = vld [vmem:[#allocation8 + $0x1d0] sm:$0xff]
        %v647 = vld [vmem:[#allocation8 + $0x1d8] sm:$0xff]
        %v648 = vld [vmem:[#allocation8 + $0x1e0] sm:$0xff]
        %v649 = vld [vmem:[#allocation8 + $0x1e8] sm:$0xff]
        %v650 = vld [vmem:[#allocation8 + $0x1f0] sm:$0xff]
        %v651 = vld [vmem:[#allocation8 + $0x1f8] sm:$0xff]
        %v652 = vld [vmem:[%s4] sm:$0xf]
        %v654 = vlaneseq
        %v655 = vshrl.u32 %v654, 7
        %v656 = vsub.s32 0, %v655
        %v657 = vrot.slane %v652, %v656
        %v658 = vlaneseq
        %v659 = vshrl.u32 %v658, 7
        %v660 = vsub.s32 1, %v659
        %v661 = vrot.slane %v652, %v660
        %v662 = vlaneseq
        %v663 = vshrl.u32 %v662, 7
        %v664 = vsub.s32 2, %v663
        %v665 = vrot.slane %v652, %v664
        %v666 = vlaneseq
        %v667 = vshrl.u32 %v666, 7
        %v668 = vsub.s32 3, %v667
        %v669 = vrot.slane %v652, %v668
        %674 = vmatprep.subr.mxu0 %v649
        %675 = vmatpush1.msra.mxu0 %v648
        %676 = vmatprep.subr.mxu0 %v645
        %677 = vmatpush1.msra.mxu0 %v644
        %678 = vmatprep.subr.mxu0 %v641
        %679 = vmatpush1.msra.mxu0 %v640
        %680 = vmatprep.subr.mxu0 %v637
        %681 = vmatpush1.msra.mxu0 %v636
        %682 = vmatprep.subr.mxu0 %v633
        %683 = vmatpush1.msra.mxu0 %v632
        %684 = vmatprep.subr.mxu0 %v629
        %685 = vmatpush1.msra.mxu0 %v628
        %686 = vmatprep.subr.mxu0 %v625
        %687 = vmatpush1.msra.mxu0 %v624
        %688 = vmatprep.subr.mxu0 %v621
        %689 = vmatpush1.msra.mxu0 %v620
        %690 = vmatprep.subr.mxu0 %v617
        %691 = vmatpush1.msra.mxu0 %v616
        %692 = vmatprep.subr.mxu0 %v613
        %693 = vmatpush1.msra.mxu0 %v612
        %694 = vmatprep.subr.mxu0 %v609
        %695 = vmatpush1.msra.mxu0 %v608
        %696 = vmatprep.subr.mxu0 %v605
        %697 = vmatpush1.msra.mxu0 %v604
        %698 = vmatprep.subr.mxu0 %v601
        %699 = vmatpush1.msra.mxu0 %v600
        %700 = vmatprep.subr.mxu0 %v597
        %701 = vmatpush1.msra.mxu0 %v596
        %702 = vmatprep.subr.mxu0 %v593
        %703 = vmatpush1.msra.mxu0 %v592
        %704 = vmatprep.subr.mxu0 %v589
        %705 = vmatpush1.msra.mxu0 %v588
        %706 = vmatprep.subr.mxu0 0.0
        %707 = vmatpush2.msra.mxu0 0.0
        %708 = vmatprep.subr.mxu0 0.0
        %709 = vmatpush2.msra.mxu0 0.0
        %710 = vmatprep.subr.mxu0 0.0
        %711 = vmatpush2.msra.mxu0 0.0
        %712 = vmatprep.subr.mxu0 0.0
        %713 = vmatpush2.msra.mxu0 0.0
        %714 = vmatprep.subr.mxu0 0.0
        %715 = vmatpush2.msra.mxu0 0.0
        %716 = vmatprep.subr.mxu0 0.0
        %717 = vmatpush2.msra.mxu0 0.0
        %718 = vmatprep.subr.mxu0 0.0
        %719 = vmatpush2.msra.mxu0 0.0
        %720 = vmatprep.subr.mxu0 0.0
        %721 = vmatpush2.msra.mxu0 0.0
        %722 = vmatprep.subr.mxu0 0.0
        %723 = vmatpush2.msra.mxu0 0.0
        %724 = vmatprep.subr.mxu0 0.0
        %725 = vmatpush2.msra.mxu0 0.0
        %726 = vmatprep.subr.mxu0 0.0
        %727 = vmatpush2.msra.mxu0 0.0
        %728 = vmatprep.subr.mxu0 0.0
        %729 = vmatpush2.msra.mxu0 0.0
        %730 = vmatprep.subr.mxu0 0.0
        %731 = vmatpush2.msra.mxu0 0.0
        %732 = vmatprep.subr.mxu0 0.0
        %733 = vmatpush2.msra.mxu0 0.0
        %734 = vmatprep.subr.mxu0 0.0
        %735 = vmatpush2.msra.mxu0 0.0
        %736 = vmatprep.subr.mxu0 0.0
        %737 = vmatpush2.msra.mxu0 0.0
        %738 = vmatprep.mubr.f32.mxu0 0.0
        %739 = vmatmul.mubr.f32.gmra.mxu0 %v585
        %v740 = vpop.f32.mrf.mxu0
        %v741 = vadd.f32 %v657, %v740
        %v742 = vpop.f32.mrf.mxu0
        %v743 = vadd.f32 %v661, %v742
        %744 = vdwg.mxu0
        %745 = vmatprep.subr.mxu0 %v651
        %746 = vmatpush1.msra.mxu0 %v650
        %747 = vmatprep.subr.mxu0 %v647
        %748 = vmatpush1.msra.mxu0 %v646
        %749 = vmatprep.subr.mxu0 %v643
        %750 = vmatpush1.msra.mxu0 %v642
        %751 = vmatprep.subr.mxu0 %v639
        %752 = vmatpush1.msra.mxu0 %v638
        %753 = vmatprep.subr.mxu0 %v635
        %754 = vmatpush1.msra.mxu0 %v634
        %755 = vmatprep.subr.mxu0 %v631
        %756 = vmatpush1.msra.mxu0 %v630
        %757 = vmatprep.subr.mxu0 %v627
        %758 = vmatpush1.msra.mxu0 %v626
        %759 = vmatprep.subr.mxu0 %v623
        %760 = vmatpush1.msra.mxu0 %v622
        %761 = vmatprep.subr.mxu0 %v619
        %762 = vmatpush1.msra.mxu0 %v618
        %763 = vmatprep.subr.mxu0 %v615
        %764 = vmatpush1.msra.mxu0 %v614
        %765 = vmatprep.subr.mxu0 %v611
        %766 = vmatpush1.msra.mxu0 %v610
        %767 = vmatprep.subr.mxu0 %v607
        %768 = vmatpush1.msra.mxu0 %v606
        %769 = vmatprep.subr.mxu0 %v603
        %770 = vmatpush1.msra.mxu0 %v602
        %771 = vmatprep.subr.mxu0 %v599
        %772 = vmatpush1.msra.mxu0 %v598
        %773 = vmatprep.subr.mxu0 %v595
        %774 = vmatpush1.msra.mxu0 %v594
        %775 = vmatprep.subr.mxu0 %v591
        %776 = vmatpush1.msra.mxu0 %v590
        %777 = vmatprep.subr.mxu0 0.0
        %778 = vmatpush2.msra.mxu0 0.0
        %779 = vmatprep.subr.mxu0 0.0
        %780 = vmatpush2.msra.mxu0 0.0
        %781 = vmatprep.subr.mxu0 0.0
        %782 = vmatpush2.msra.mxu0 0.0
        %783 = vmatprep.subr.mxu0 0.0
        %784 = vmatpush2.msra.mxu0 0.0
        %785 = vmatprep.subr.mxu0 0.0
        %786 = vmatpush2.msra.mxu0 0.0
        %787 = vmatprep.subr.mxu0 0.0
        %788 = vmatpush2.msra.mxu0 0.0
        %789 = vmatprep.subr.mxu0 0.0
        %790 = vmatpush2.msra.mxu0 0.0
        %791 = vmatprep.subr.mxu0 0.0
        %792 = vmatpush2.msra.mxu0 0.0
        %793 = vmatprep.subr.mxu0 0.0
        %794 = vmatpush2.msra.mxu0 0.0
        %795 = vmatprep.subr.mxu0 0.0
        %796 = vmatpush2.msra.mxu0 0.0
        %797 = vmatprep.subr.mxu0 0.0
        %798 = vmatpush2.msra.mxu0 0.0
        %799 = vmatprep.subr.mxu0 0.0
        %800 = vmatpush2.msra.mxu0 0.0
        %801 = vmatprep.subr.mxu0 0.0
        %802 = vmatpush2.msra.mxu0 0.0
        %803 = vmatprep.subr.mxu0 0.0
        %804 = vmatpush2.msra.mxu0 0.0
        %805 = vmatprep.subr.mxu0 0.0
        %806 = vmatpush2.msra.mxu0 0.0
        %807 = vmatprep.subr.mxu0 0.0
        %808 = vmatpush2.msra.mxu0 0.0
        %809 = vmatprep.mubr.f32.mxu0 0.0
        %810 = vmatmul.mubr.f32.gmra.mxu0 %v585
        %v811 = vpop.f32.mrf.mxu0
        %v812 = vadd.f32 %v665, %v811
        %v813 = vpop.f32.mrf.mxu0
        %v814 = vadd.f32 %v669, %v813
        %815 = vdwg.mxu0
        %v816 = vld [vmem:[#allocation10] sm:$0xff]
        %v817 = vld [vmem:[#allocation10 + $0x8] sm:$0xff]
        %v818 = vld [vmem:[#allocation10 + $0x10] sm:$0xff]
        %v819 = vld [vmem:[#allocation10 + $0x18] sm:$0xff]
        %v820 = vld [vmem:[#allocation10 + $0x20] sm:$0xff]
        %v821 = vld [vmem:[#allocation10 + $0x28] sm:$0xff]
        %v822 = vld [vmem:[#allocation10 + $0x30] sm:$0xff]
        %v823 = vld [vmem:[#allocation10 + $0x38] sm:$0xff]
        %v824 = vld [vmem:[#allocation10 + $0x40] sm:$0xff]
        %v825 = vld [vmem:[#allocation10 + $0x48] sm:$0xff]
        %v826 = vld [vmem:[#allocation10 + $0x50] sm:$0xff]
        %v827 = vld [vmem:[#allocation10 + $0x58] sm:$0xff]
        %v828 = vld [vmem:[#allocation10 + $0x60] sm:$0xff]
        %v829 = vld [vmem:[#allocation10 + $0x68] sm:$0xff]
        %v830 = vld [vmem:[#allocation10 + $0x70] sm:$0xff]
        %v831 = vld [vmem:[#allocation10 + $0x78] sm:$0xff]
        %v832 = vld [vmem:[#allocation10 + $0x80] sm:$0xff]
        %v833 = vld [vmem:[#allocation10 + $0x88] sm:$0xff]
        %v834 = vld [vmem:[#allocation10 + $0x90] sm:$0xff]
        %v835 = vld [vmem:[#allocation10 + $0x98] sm:$0xff]
        %v836 = vld [vmem:[#allocation10 + $0xa0] sm:$0xff]
        %v837 = vld [vmem:[#allocation10 + $0xa8] sm:$0xff]
        %v838 = vld [vmem:[#allocation10 + $0xb0] sm:$0xff]
        %v839 = vld [vmem:[#allocation10 + $0xb8] sm:$0xff]
        %v840 = vld [vmem:[#allocation10 + $0xc0] sm:$0xff]
        %v841 = vld [vmem:[#allocation10 + $0xc8] sm:$0xff]
        %v842 = vld [vmem:[#allocation10 + $0xd0] sm:$0xff]
        %v843 = vld [vmem:[#allocation10 + $0xd8] sm:$0xff]
        %v844 = vld [vmem:[#allocation10 + $0xe0] sm:$0xff]
        %v845 = vld [vmem:[#allocation10 + $0xe8] sm:$0xff]
        %v846 = vld [vmem:[#allocation10 + $0xf0] sm:$0xff]
        %v847 = vld [vmem:[#allocation10 + $0xf8] sm:$0xff]
        %v848 = vld [vmem:[#allocation10 + $0x100] sm:$0xff]
        %v849 = vld [vmem:[#allocation10 + $0x108] sm:$0xff]
        %v850 = vld [vmem:[#allocation10 + $0x110] sm:$0xff]
        %v851 = vld [vmem:[#allocation10 + $0x118] sm:$0xff]
        %v852 = vld [vmem:[#allocation10 + $0x120] sm:$0xff]
        %v853 = vld [vmem:[#allocation10 + $0x128] sm:$0xff]
        %v854 = vld [vmem:[#allocation10 + $0x130] sm:$0xff]
        %v855 = vld [vmem:[#allocation10 + $0x138] sm:$0xff]
        %v856 = vld [vmem:[#allocation10 + $0x140] sm:$0xff]
        %v857 = vld [vmem:[#allocation10 + $0x148] sm:$0xff]
        %v858 = vld [vmem:[#allocation10 + $0x150] sm:$0xff]
        %v859 = vld [vmem:[#allocation10 + $0x158] sm:$0xff]
        %v860 = vld [vmem:[#allocation10 + $0x160] sm:$0xff]
        %v861 = vld [vmem:[#allocation10 + $0x168] sm:$0xff]
        %v862 = vld [vmem:[#allocation10 + $0x170] sm:$0xff]
        %v863 = vld [vmem:[#allocation10 + $0x178] sm:$0xff]
        %v864 = vld [vmem:[#allocation10 + $0x180] sm:$0xff]
        %v865 = vld [vmem:[#allocation10 + $0x188] sm:$0xff]
        %v866 = vld [vmem:[#allocation10 + $0x190] sm:$0xff]
        %v867 = vld [vmem:[#allocation10 + $0x198] sm:$0xff]
        %v868 = vld [vmem:[#allocation10 + $0x1a0] sm:$0xff]
        %v869 = vld [vmem:[#allocation10 + $0x1a8] sm:$0xff]
        %v870 = vld [vmem:[#allocation10 + $0x1b0] sm:$0xff]
        %v871 = vld [vmem:[#allocation10 + $0x1b8] sm:$0xff]
        %v872 = vld [vmem:[#allocation10 + $0x1c0] sm:$0xff]
        %v873 = vld [vmem:[#allocation10 + $0x1c8] sm:$0xff]
        %v874 = vld [vmem:[#allocation10 + $0x1d0] sm:$0xff]
        %v875 = vld [vmem:[#allocation10 + $0x1d8] sm:$0xff]
        %v876 = vld [vmem:[#allocation10 + $0x1e0] sm:$0xff]
        %v877 = vld [vmem:[#allocation10 + $0x1e8] sm:$0xff]
        %v878 = vld [vmem:[#allocation10 + $0x1f0] sm:$0xff]
        %v879 = vld [vmem:[#allocation10 + $0x1f8] sm:$0xff]
        %v880 = vld [vmem:[%s6] sm:$0xf]
        %v882 = vlaneseq
        %v883 = vshrl.u32 %v882, 7
        %v884 = vsub.s32 0, %v883
        %v885 = vrot.slane %v880, %v884
        %v886 = vlaneseq
        %v887 = vshrl.u32 %v886, 7
        %v888 = vsub.s32 1, %v887
        %v889 = vrot.slane %v880, %v888
        %v890 = vlaneseq
        %v891 = vshrl.u32 %v890, 7
        %v892 = vsub.s32 2, %v891
        %v893 = vrot.slane %v880, %v892
        %v894 = vlaneseq
        %v895 = vshrl.u32 %v894, 7
        %v896 = vsub.s32 3, %v895
        %v897 = vrot.slane %v880, %v896
        %902 = vmatprep.subr.mxu0 %v877
        %903 = vmatpush1.msra.mxu0 %v876
        %904 = vmatprep.subr.mxu0 %v873
        %905 = vmatpush1.msra.mxu0 %v872
        %906 = vmatprep.subr.mxu0 %v869
        %907 = vmatpush1.msra.mxu0 %v868
        %908 = vmatprep.subr.mxu0 %v865
        %909 = vmatpush1.msra.mxu0 %v864
        %910 = vmatprep.subr.mxu0 %v861
        %911 = vmatpush1.msra.mxu0 %v860
        %912 = vmatprep.subr.mxu0 %v857
        %913 = vmatpush1.msra.mxu0 %v856
        %914 = vmatprep.subr.mxu0 %v853
        %915 = vmatpush1.msra.mxu0 %v852
        %916 = vmatprep.subr.mxu0 %v849
        %917 = vmatpush1.msra.mxu0 %v848
        %918 = vmatprep.subr.mxu0 %v845
        %919 = vmatpush1.msra.mxu0 %v844
        %920 = vmatprep.subr.mxu0 %v841
        %921 = vmatpush1.msra.mxu0 %v840
        %922 = vmatprep.subr.mxu0 %v837
        %923 = vmatpush1.msra.mxu0 %v836
        %924 = vmatprep.subr.mxu0 %v833
        %925 = vmatpush1.msra.mxu0 %v832
        %926 = vmatprep.subr.mxu0 %v829
        %927 = vmatpush1.msra.mxu0 %v828
        %928 = vmatprep.subr.mxu0 %v825
        %929 = vmatpush1.msra.mxu0 %v824
        %930 = vmatprep.subr.mxu0 %v821
        %931 = vmatpush1.msra.mxu0 %v820
        %932 = vmatprep.subr.mxu0 %v817
        %933 = vmatpush1.msra.mxu0 %v816
        %934 = vmatprep.subr.mxu0 0.0
        %935 = vmatpush2.msra.mxu0 0.0
        %936 = vmatprep.subr.mxu0 0.0
        %937 = vmatpush2.msra.mxu0 0.0
        %938 = vmatprep.subr.mxu0 0.0
        %939 = vmatpush2.msra.mxu0 0.0
        %940 = vmatprep.subr.mxu0 0.0
        %941 = vmatpush2.msra.mxu0 0.0
        %942 = vmatprep.subr.mxu0 0.0
        %943 = vmatpush2.msra.mxu0 0.0
        %944 = vmatprep.subr.mxu0 0.0
        %945 = vmatpush2.msra.mxu0 0.0
        %946 = vmatprep.subr.mxu0 0.0
        %947 = vmatpush2.msra.mxu0 0.0
        %948 = vmatprep.subr.mxu0 0.0
        %949 = vmatpush2.msra.mxu0 0.0
        %950 = vmatprep.subr.mxu0 0.0
        %951 = vmatpush2.msra.mxu0 0.0
        %952 = vmatprep.subr.mxu0 0.0
        %953 = vmatpush2.msra.mxu0 0.0
        %954 = vmatprep.subr.mxu0 0.0
        %955 = vmatpush2.msra.mxu0 0.0
        %956 = vmatprep.subr.mxu0 0.0
        %957 = vmatpush2.msra.mxu0 0.0
        %958 = vmatprep.subr.mxu0 0.0
        %959 = vmatpush2.msra.mxu0 0.0
        %960 = vmatprep.subr.mxu0 0.0
        %961 = vmatpush2.msra.mxu0 0.0
        %962 = vmatprep.subr.mxu0 0.0
        %963 = vmatpush2.msra.mxu0 0.0
        %964 = vmatprep.subr.mxu0 0.0
        %965 = vmatpush2.msra.mxu0 0.0
        %966 = vmatprep.mubr.f32.mxu0 0.0
        %967 = vmatmul.mubr.f32.gmra.mxu0 %v586
        %v968 = vpop.f32.mrf.mxu0
        %v969 = vadd.f32 %v885, %v968
        %v970 = vpop.f32.mrf.mxu0
        %v971 = vadd.f32 %v889, %v970
        %972 = vdwg.mxu0
        %973 = vmatprep.subr.mxu0 %v879
        %974 = vmatpush1.msra.mxu0 %v878
        %975 = vmatprep.subr.mxu0 %v875
        %976 = vmatpush1.msra.mxu0 %v874
        %977 = vmatprep.subr.mxu0 %v871
        %978 = vmatpush1.msra.mxu0 %v870
        %979 = vmatprep.subr.mxu0 %v867
        %980 = vmatpush1.msra.mxu0 %v866
        %981 = vmatprep.subr.mxu0 %v863
        %982 = vmatpush1.msra.mxu0 %v862
        %983 = vmatprep.subr.mxu0 %v859
        %984 = vmatpush1.msra.mxu0 %v858
        %985 = vmatprep.subr.mxu0 %v855
        %986 = vmatpush1.msra.mxu0 %v854
        %987 = vmatprep.subr.mxu0 %v851
        %988 = vmatpush1.msra.mxu0 %v850
        %989 = vmatprep.subr.mxu0 %v847
        %990 = vmatpush1.msra.mxu0 %v846
        %991 = vmatprep.subr.mxu0 %v843
        %992 = vmatpush1.msra.mxu0 %v842
        %993 = vmatprep.subr.mxu0 %v839
        %994 = vmatpush1.msra.mxu0 %v838
        %995 = vmatprep.subr.mxu0 %v835
        %996 = vmatpush1.msra.mxu0 %v834
        %997 = vmatprep.subr.mxu0 %v831
        %998 = vmatpush1.msra.mxu0 %v830
        %999 = vmatprep.subr.mxu0 %v827
        %1000 = vmatpush1.msra.mxu0 %v826
        %1001 = vmatprep.subr.mxu0 %v823
        %1002 = vmatpush1.msra.mxu0 %v822
        %1003 = vmatprep.subr.mxu0 %v819
        %1004 = vmatpush1.msra.mxu0 %v818
        %1005 = vmatprep.subr.mxu0 0.0
        %1006 = vmatpush2.msra.mxu0 0.0
        %1007 = vmatprep.subr.mxu0 0.0
        %1008 = vmatpush2.msra.mxu0 0.0
        %1009 = vmatprep.subr.mxu0 0.0
        %1010 = vmatpush2.msra.mxu0 0.0
        %1011 = vmatprep.subr.mxu0 0.0
        %1012 = vmatpush2.msra.mxu0 0.0
        %1013 = vmatprep.subr.mxu0 0.0
        %1014 = vmatpush2.msra.mxu0 0.0
        %1015 = vmatprep.subr.mxu0 0.0
        %1016 = vmatpush2.msra.mxu0 0.0
        %1017 = vmatprep.subr.mxu0 0.0
        %1018 = vmatpush2.msra.mxu0 0.0
        %1019 = vmatprep.subr.mxu0 0.0
        %1020 = vmatpush2.msra.mxu0 0.0
        %1021 = vmatprep.subr.mxu0 0.0
        %1022 = vmatpush2.msra.mxu0 0.0
        %1023 = vmatprep.subr.mxu0 0.0
        %1024 = vmatpush2.msra.mxu0 0.0
        %1025 = vmatprep.subr.mxu0 0.0
        %1026 = vmatpush2.msra.mxu0 0.0
        %1027 = vmatprep.subr.mxu0 0.0
        %1028 = vmatpush2.msra.mxu0 0.0
        %1029 = vmatprep.subr.mxu0 0.0
        %1030 = vmatpush2.msra.mxu0 0.0
        %1031 = vmatprep.subr.mxu0 0.0
        %1032 = vmatpush2.msra.mxu0 0.0
        %1033 = vmatprep.subr.mxu0 0.0
        %1034 = vmatpush2.msra.mxu0 0.0
        %1035 = vmatprep.subr.mxu0 0.0
        %1036 = vmatpush2.msra.mxu0 0.0
        %1037 = vmatprep.mubr.f32.mxu0 0.0
        %1038 = vmatmul.mubr.f32.gmra.mxu0 %v586
        %v1039 = vpop.f32.mrf.mxu0
        %v1040 = vadd.f32 %v893, %v1039
        %v1041 = vpop.f32.mrf.mxu0
        %v1042 = vadd.f32 %v897, %v1041
        %1043 = vdwg.mxu0
        %v1044 = vld [vmem:[#allocation11] sm:$0xff]
        %v1045 = vld [vmem:[#allocation11 + $0x8] sm:$0xff]
        %v1046 = vld [vmem:[#allocation11 + $0x10] sm:$0xff]
        %v1047 = vld [vmem:[#allocation11 + $0x18] sm:$0xff]
        %v1048 = vld [vmem:[#allocation11 + $0x20] sm:$0xff]
        %v1049 = vld [vmem:[#allocation11 + $0x28] sm:$0xff]
        %v1050 = vld [vmem:[#allocation11 + $0x30] sm:$0xff]
        %v1051 = vld [vmem:[#allocation11 + $0x38] sm:$0xff]
        %v1052 = vld [vmem:[#allocation11 + $0x40] sm:$0xff]
        %v1053 = vld [vmem:[#allocation11 + $0x48] sm:$0xff]
        %v1054 = vld [vmem:[#allocation11 + $0x50] sm:$0xff]
        %v1055 = vld [vmem:[#allocation11 + $0x58] sm:$0xff]
        %v1056 = vld [vmem:[#allocation11 + $0x60] sm:$0xff]
        %v1057 = vld [vmem:[#allocation11 + $0x68] sm:$0xff]
        %v1058 = vld [vmem:[#allocation11 + $0x70] sm:$0xff]
        %v1059 = vld [vmem:[#allocation11 + $0x78] sm:$0xff]
        %v1060 = vld [vmem:[#allocation11 + $0x80] sm:$0xff]
        %v1061 = vld [vmem:[#allocation11 + $0x88] sm:$0xff]
        %v1062 = vld [vmem:[#allocation11 + $0x90] sm:$0xff]
        %v1063 = vld [vmem:[#allocation11 + $0x98] sm:$0xff]
        %v1064 = vld [vmem:[#allocation11 + $0xa0] sm:$0xff]
        %v1065 = vld [vmem:[#allocation11 + $0xa8] sm:$0xff]
        %v1066 = vld [vmem:[#allocation11 + $0xb0] sm:$0xff]
        %v1067 = vld [vmem:[#allocation11 + $0xb8] sm:$0xff]
        %v1068 = vld [vmem:[#allocation11 + $0xc0] sm:$0xff]
        %v1069 = vld [vmem:[#allocation11 + $0xc8] sm:$0xff]
        %v1070 = vld [vmem:[#allocation11 + $0xd0] sm:$0xff]
        %v1071 = vld [vmem:[#allocation11 + $0xd8] sm:$0xff]
        %v1072 = vld [vmem:[#allocation11 + $0xe0] sm:$0xff]
        %v1073 = vld [vmem:[#allocation11 + $0xe8] sm:$0xff]
        %v1074 = vld [vmem:[#allocation11 + $0xf0] sm:$0xff]
        %v1075 = vld [vmem:[#allocation11 + $0xf8] sm:$0xff]
        %v1076 = vld [vmem:[#allocation11 + $0x100] sm:$0xff]
        %v1077 = vld [vmem:[#allocation11 + $0x108] sm:$0xff]
        %v1078 = vld [vmem:[#allocation11 + $0x110] sm:$0xff]
        %v1079 = vld [vmem:[#allocation11 + $0x118] sm:$0xff]
        %v1080 = vld [vmem:[#allocation11 + $0x120] sm:$0xff]
        %v1081 = vld [vmem:[#allocation11 + $0x128] sm:$0xff]
        %v1082 = vld [vmem:[#allocation11 + $0x130] sm:$0xff]
        %v1083 = vld [vmem:[#allocation11 + $0x138] sm:$0xff]
        %v1084 = vld [vmem:[#allocation11 + $0x140] sm:$0xff]
        %v1085 = vld [vmem:[#allocation11 + $0x148] sm:$0xff]
        %v1086 = vld [vmem:[#allocation11 + $0x150] sm:$0xff]
        %v1087 = vld [vmem:[#allocation11 + $0x158] sm:$0xff]
        %v1088 = vld [vmem:[#allocation11 + $0x160] sm:$0xff]
        %v1089 = vld [vmem:[#allocation11 + $0x168] sm:$0xff]
        %v1090 = vld [vmem:[#allocation11 + $0x170] sm:$0xff]
        %v1091 = vld [vmem:[#allocation11 + $0x178] sm:$0xff]
        %v1092 = vld [vmem:[#allocation11 + $0x180] sm:$0xff]
        %v1093 = vld [vmem:[#allocation11 + $0x188] sm:$0xff]
        %v1094 = vld [vmem:[#allocation11 + $0x190] sm:$0xff]
        %v1095 = vld [vmem:[#allocation11 + $0x198] sm:$0xff]
        %v1096 = vld [vmem:[#allocation11 + $0x1a0] sm:$0xff]
        %v1097 = vld [vmem:[#allocation11 + $0x1a8] sm:$0xff]
        %v1098 = vld [vmem:[#allocation11 + $0x1b0] sm:$0xff]
        %v1099 = vld [vmem:[#allocation11 + $0x1b8] sm:$0xff]
        %v1100 = vld [vmem:[#allocation11 + $0x1c0] sm:$0xff]
        %v1101 = vld [vmem:[#allocation11 + $0x1c8] sm:$0xff]
        %v1102 = vld [vmem:[#allocation11 + $0x1d0] sm:$0xff]
        %v1103 = vld [vmem:[#allocation11 + $0x1d8] sm:$0xff]
        %v1104 = vld [vmem:[#allocation11 + $0x1e0] sm:$0xff]
        %v1105 = vld [vmem:[#allocation11 + $0x1e8] sm:$0xff]
        %v1106 = vld [vmem:[#allocation11 + $0x1f0] sm:$0xff]
        %v1107 = vld [vmem:[#allocation11 + $0x1f8] sm:$0xff]
        %v1108 = vld [vmem:[%s8] sm:$0xf]
        %v1110 = vlaneseq
        %v1111 = vshrl.u32 %v1110, 7
        %v1112 = vsub.s32 0, %v1111
        %v1113 = vrot.slane %v1108, %v1112
        %v1114 = vlaneseq
        %v1115 = vshrl.u32 %v1114, 7
        %v1116 = vsub.s32 1, %v1115
        %v1117 = vrot.slane %v1108, %v1116
        %v1118 = vlaneseq
        %v1119 = vshrl.u32 %v1118, 7
        %v1120 = vsub.s32 2, %v1119
        %v1121 = vrot.slane %v1108, %v1120
        %v1122 = vlaneseq
        %v1123 = vshrl.u32 %v1122, 7
        %v1124 = vsub.s32 3, %v1123
        %v1125 = vrot.slane %v1108, %v1124
        %1130 = vmatprep.subr.mxu0 %v1105
        %1131 = vmatpush1.msra.mxu0 %v1104
        %1132 = vmatprep.subr.mxu0 %v1101
        %1133 = vmatpush1.msra.mxu0 %v1100
        %1134 = vmatprep.subr.mxu0 %v1097
        %1135 = vmatpush1.msra.mxu0 %v1096
        %1136 = vmatprep.subr.mxu0 %v1093
        %1137 = vmatpush1.msra.mxu0 %v1092
        %1138 = vmatprep.subr.mxu0 %v1089
        %1139 = vmatpush1.msra.mxu0 %v1088
        %1140 = vmatprep.subr.mxu0 %v1085
        %1141 = vmatpush1.msra.mxu0 %v1084
        %1142 = vmatprep.subr.mxu0 %v1081
        %1143 = vmatpush1.msra.mxu0 %v1080
        %1144 = vmatprep.subr.mxu0 %v1077
        %1145 = vmatpush1.msra.mxu0 %v1076
        %1146 = vmatprep.subr.mxu0 %v1073
        %1147 = vmatpush1.msra.mxu0 %v1072
        %1148 = vmatprep.subr.mxu0 %v1069
        %1149 = vmatpush1.msra.mxu0 %v1068
        %1150 = vmatprep.subr.mxu0 %v1065
        %1151 = vmatpush1.msra.mxu0 %v1064
        %1152 = vmatprep.subr.mxu0 %v1061
        %1153 = vmatpush1.msra.mxu0 %v1060
        %1154 = vmatprep.subr.mxu0 %v1057
        %1155 = vmatpush1.msra.mxu0 %v1056
        %1156 = vmatprep.subr.mxu0 %v1053
        %1157 = vmatpush1.msra.mxu0 %v1052
        %1158 = vmatprep.subr.mxu0 %v1049
        %1159 = vmatpush1.msra.mxu0 %v1048
        %1160 = vmatprep.subr.mxu0 %v1045
        %1161 = vmatpush1.msra.mxu0 %v1044
        %1162 = vmatprep.subr.mxu0 0.0
        %1163 = vmatpush2.msra.mxu0 0.0
        %1164 = vmatprep.subr.mxu0 0.0
        %1165 = vmatpush2.msra.mxu0 0.0
        %1166 = vmatprep.subr.mxu0 0.0
        %1167 = vmatpush2.msra.mxu0 0.0
        %1168 = vmatprep.subr.mxu0 0.0
        %1169 = vmatpush2.msra.mxu0 0.0
        %1170 = vmatprep.subr.mxu0 0.0
        %1171 = vmatpush2.msra.mxu0 0.0
        %1172 = vmatprep.subr.mxu0 0.0
        %1173 = vmatpush2.msra.mxu0 0.0
        %1174 = vmatprep.subr.mxu0 0.0
        %1175 = vmatpush2.msra.mxu0 0.0
        %1176 = vmatprep.subr.mxu0 0.0
        %1177 = vmatpush2.msra.mxu0 0.0
        %1178 = vmatprep.subr.mxu0 0.0
        %1179 = vmatpush2.msra.mxu0 0.0
        %1180 = vmatprep.subr.mxu0 0.0
        %1181 = vmatpush2.msra.mxu0 0.0
        %1182 = vmatprep.subr.mxu0 0.0
        %1183 = vmatpush2.msra.mxu0 0.0
        %1184 = vmatprep.subr.mxu0 0.0
        %1185 = vmatpush2.msra.mxu0 0.0
        %1186 = vmatprep.subr.mxu0 0.0
        %1187 = vmatpush2.msra.mxu0 0.0
        %1188 = vmatprep.subr.mxu0 0.0
        %1189 = vmatpush2.msra.mxu0 0.0
        %1190 = vmatprep.subr.mxu0 0.0
        %1191 = vmatpush2.msra.mxu0 0.0
        %1192 = vmatprep.subr.mxu0 0.0
        %1193 = vmatpush2.msra.mxu0 0.0
        %1194 = vmatprep.mubr.f32.mxu0 0.0
        %1195 = vmatmul.mubr.f32.gmra.mxu0 %v587
        %v1196 = vpop.f32.mrf.mxu0
        %v1197 = vadd.f32 %v1113, %v1196
        %v1198 = vpop.f32.mrf.mxu0
        %v1199 = vadd.f32 %v1117, %v1198
        %1200 = vdwg.mxu0
        %1201 = vmatprep.subr.mxu0 %v1107
        %1202 = vmatpush1.msra.mxu0 %v1106
        %1203 = vmatprep.subr.mxu0 %v1103
        %1204 = vmatpush1.msra.mxu0 %v1102
        %1205 = vmatprep.subr.mxu0 %v1099
        %1206 = vmatpush1.msra.mxu0 %v1098
        %1207 = vmatprep.subr.mxu0 %v1095
        %1208 = vmatpush1.msra.mxu0 %v1094
        %1209 = vmatprep.subr.mxu0 %v1091
        %1210 = vmatpush1.msra.mxu0 %v1090
        %1211 = vmatprep.subr.mxu0 %v1087
        %1212 = vmatpush1.msra.mxu0 %v1086
        %1213 = vmatprep.subr.mxu0 %v1083
        %1214 = vmatpush1.msra.mxu0 %v1082
        %1215 = vmatprep.subr.mxu0 %v1079
        %1216 = vmatpush1.msra.mxu0 %v1078
        %1217 = vmatprep.subr.mxu0 %v1075
        %1218 = vmatpush1.msra.mxu0 %v1074
        %1219 = vmatprep.subr.mxu0 %v1071
        %1220 = vmatpush1.msra.mxu0 %v1070
        %1221 = vmatprep.subr.mxu0 %v1067
        %1222 = vmatpush1.msra.mxu0 %v1066
        %1223 = vmatprep.subr.mxu0 %v1063
        %1224 = vmatpush1.msra.mxu0 %v1062
        %1225 = vmatprep.subr.mxu0 %v1059
        %1226 = vmatpush1.msra.mxu0 %v1058
        %1227 = vmatprep.subr.mxu0 %v1055
        %1228 = vmatpush1.msra.mxu0 %v1054
        %1229 = vmatprep.subr.mxu0 %v1051
        %1230 = vmatpush1.msra.mxu0 %v1050
        %1231 = vmatprep.subr.mxu0 %v1047
        %1232 = vmatpush1.msra.mxu0 %v1046
        %1233 = vmatprep.subr.mxu0 0.0
        %1234 = vmatpush2.msra.mxu0 0.0
        %1235 = vmatprep.subr.mxu0 0.0
        %1236 = vmatpush2.msra.mxu0 0.0
        %1237 = vmatprep.subr.mxu0 0.0
        %1238 = vmatpush2.msra.mxu0 0.0
        %1239 = vmatprep.subr.mxu0 0.0
        %1240 = vmatpush2.msra.mxu0 0.0
        %1241 = vmatprep.subr.mxu0 0.0
        %1242 = vmatpush2.msra.mxu0 0.0
        %1243 = vmatprep.subr.mxu0 0.0
        %1244 = vmatpush2.msra.mxu0 0.0
        %1245 = vmatprep.subr.mxu0 0.0
        %1246 = vmatpush2.msra.mxu0 0.0
        %1247 = vmatprep.subr.mxu0 0.0
        %1248 = vmatpush2.msra.mxu0 0.0
        %1249 = vmatprep.subr.mxu0 0.0
        %1250 = vmatpush2.msra.mxu0 0.0
        %1251 = vmatprep.subr.mxu0 0.0
        %1252 = vmatpush2.msra.mxu0 0.0
        %1253 = vmatprep.subr.mxu0 0.0
        %1254 = vmatpush2.msra.mxu0 0.0
        %1255 = vmatprep.subr.mxu0 0.0
        %1256 = vmatpush2.msra.mxu0 0.0
        %1257 = vmatprep.subr.mxu0 0.0
        %1258 = vmatpush2.msra.mxu0 0.0
        %1259 = vmatprep.subr.mxu0 0.0
        %1260 = vmatpush2.msra.mxu0 0.0
        %1261 = vmatprep.subr.mxu0 0.0
        %1262 = vmatpush2.msra.mxu0 0.0
        %1263 = vmatprep.subr.mxu0 0.0
        %1264 = vmatpush2.msra.mxu0 0.0
        %1265 = vmatprep.mubr.f32.mxu0 0.0
        %1266 = vmatmul.mubr.f32.gmra.mxu0 %v587
        %v1267 = vpop.f32.mrf.mxu0
        %v1268 = vadd.f32 %v1121, %v1267
        %v1269 = vpop.f32.mrf.mxu0
        %v1270 = vadd.f32 %v1125, %v1269
        %1271 = vdwg.mxu0
        %v1272 = vcombine.low %v741, %v812
        %v1273 = vcombine.high %v741, %v812
        %v1275 = vunpack.c.l.s4 1983009808
        %v1276 = vunpack.c.0.s8 %v1275
        %v1277 = vlaneseq
        %v1278 = vshrl.u32 %v1277, 7
        %v1279 = vsub.s32 %v1276, %v1278
        %v1280 = vrot.slane %v1272, %v1279
        %v1282 = vunpack.c.l.s4 1983009808
        %v1283 = vunpack.c.0.s8 %v1282
        %v1284 = vlaneseq
        %v1285 = vshrl.u32 %v1284, 7
        %v1286 = vsub.s32 %v1283, %v1285
        %v1287 = vrot.slane %v1273, %v1286
        %v1288 = vcombine.low %v743, %v814
        %v1289 = vcombine.high %v743, %v814
        %v1291 = vunpack.c.l.s4 1983009808
        %v1292 = vunpack.c.0.s8 %v1291
        %v1293 = vlaneseq
        %v1294 = vshrl.u32 %v1293, 7
        %v1295 = vsub.s32 %v1292, %v1294
        %v1296 = vrot.slane %v1288, %v1295
        %v1298 = vunpack.c.l.s4 1983009808
        %v1299 = vunpack.c.0.s8 %v1298
        %v1300 = vlaneseq
        %v1301 = vshrl.u32 %v1300, 7
        %v1302 = vsub.s32 %v1299, %v1301
        %v1303 = vrot.slane %v1289, %v1302
        %v1304 = vcombine.low %v1280, %v1296
        %v1305 = vcombine.high %v1280, %v1296
        %v1307 = vunpack.c.l.s4 1934713408
        %v1308 = vunpack.c.0.s8 %v1307
        %v1309 = vlaneseq
        %v1310 = vshrl.u32 %v1309, 7
        %v1311 = vsub.s32 %v1308, %v1310
        %v1312 = vrot.slane %v1304, %v1311
        %v1314 = vunpack.c.l.s4 1934713408
        %v1315 = vunpack.c.0.s8 %v1314
        %v1316 = vlaneseq
        %v1317 = vshrl.u32 %v1316, 7
        %v1318 = vsub.s32 %v1315, %v1317
        %v1319 = vrot.slane %v1305, %v1318
        %v1320 = vcombine.low %v1287, %v1303
        %v1321 = vcombine.high %v1287, %v1303
        %v1323 = vunpack.c.l.s4 1934713408
        %v1324 = vunpack.c.0.s8 %v1323
        %v1325 = vlaneseq
        %v1326 = vshrl.u32 %v1325, 7
        %v1327 = vsub.s32 %v1324, %v1326
        %v1328 = vrot.slane %v1320, %v1327
        %v1330 = vunpack.c.l.s4 1934713408
        %v1331 = vunpack.c.0.s8 %v1330
        %v1332 = vlaneseq
        %v1333 = vshrl.u32 %v1332, 7
        %v1334 = vsub.s32 %v1331, %v1333
        %v1335 = vrot.slane %v1321, %v1334
        %v1336 = vcombine.high %v1312, 0.0
        %v1337 = vcombine.high %v1319, 0.0
        %v1338 = vcombine.high %v1328, 0.0
        %v1339 = vcombine.high %v1335, 0.0
        %v1340 = vcombine.low %v1312, %v1319
        %v1342 = vunpack.c.l.s4 1983009808
        %v1343 = vunpack.c.0.s8 %v1342
        %v1344 = vlaneseq
        %v1345 = vshrl.u32 %v1344, 7
        %v1346 = vsub.s32 %v1343, %v1345
        %v1347 = vrot.slane %v1340, %v1346
        %v1348 = vcombine.low %v1336, %v1337
        %v1350 = vunpack.c.l.s4 1983009808
        %v1351 = vunpack.c.0.s8 %v1350
        %v1352 = vlaneseq
        %v1353 = vshrl.u32 %v1352, 7
        %v1354 = vsub.s32 %v1351, %v1353
        %v1355 = vrot.slane %v1348, %v1354
        %v1356 = vcombine.low %v1328, %v1335
        %v1358 = vunpack.c.l.s4 1983009808
        %v1359 = vunpack.c.0.s8 %v1358
        %v1360 = vlaneseq
        %v1361 = vshrl.u32 %v1360, 7
        %v1362 = vsub.s32 %v1359, %v1361
        %v1363 = vrot.slane %v1356, %v1362
        %v1364 = vcombine.low %v1338, %v1339
        %v1366 = vunpack.c.l.s4 1983009808
        %v1367 = vunpack.c.0.s8 %v1366
        %v1368 = vlaneseq
        %v1369 = vshrl.u32 %v1368, 7
        %v1370 = vsub.s32 %v1367, %v1369
        %v1371 = vrot.slane %v1364, %v1370
        %v1372 = vcombine.low %v1347, %v1355
        %v1373 = vcombine.high %v1347, %v1355
        %v1375 = vunpack.c.l.s4 1934713408
        %v1376 = vunpack.c.0.s8 %v1375
        %v1377 = vlaneseq
        %v1378 = vshrl.u32 %v1377, 7
        %v1379 = vsub.s32 %v1376, %v1378
        %v1380 = vrot.slane %v1372, %v1379
        %v1382 = vunpack.c.l.s4 1934713408
        %v1383 = vunpack.c.0.s8 %v1382
        %v1384 = vlaneseq
        %v1385 = vshrl.u32 %v1384, 7
        %v1386 = vsub.s32 %v1383, %v1385
        %v1387 = vrot.slane %v1373, %v1386
        %v1388 = vcombine.low %v1363, %v1371
        %v1389 = vcombine.high %v1363, %v1371
        %v1391 = vunpack.c.l.s4 1934713408
        %v1392 = vunpack.c.0.s8 %v1391
        %v1393 = vlaneseq
        %v1394 = vshrl.u32 %v1393, 7
        %v1395 = vsub.s32 %v1392, %v1394
        %v1396 = vrot.slane %v1388, %v1395
        %v1398 = vunpack.c.l.s4 1934713408
        %v1399 = vunpack.c.0.s8 %v1398
        %v1400 = vlaneseq
        %v1401 = vshrl.u32 %v1400, 7
        %v1402 = vsub.s32 %v1399, %v1401
        %v1403 = vrot.slane %v1389, %v1402
        %v1404 = vcombine.low %v1380, %v1396
        %v1405 = vcombine.high %v1380, %v1396
        %v1406 = vcombine.low %v1387, %v1403
        %v1407 = vcombine.high %v1387, %v1403
        %v1408 = vcombine.low %v969, %v1040
        %v1409 = vcombine.high %v969, %v1040
        %v1411 = vunpack.c.l.s4 1983009808
        %v1412 = vunpack.c.0.s8 %v1411
        %v1413 = vlaneseq
        %v1414 = vshrl.u32 %v1413, 7
        %v1415 = vsub.s32 %v1412, %v1414
        %v1416 = vrot.slane %v1408, %v1415
        %v1418 = vunpack.c.l.s4 1983009808
        %v1419 = vunpack.c.0.s8 %v1418
        %v1420 = vlaneseq
        %v1421 = vshrl.u32 %v1420, 7
        %v1422 = vsub.s32 %v1419, %v1421
        %v1423 = vrot.slane %v1409, %v1422
        %v1424 = vcombine.low %v971, %v1042
        %v1425 = vcombine.high %v971, %v1042
        %v1427 = vunpack.c.l.s4 1983009808
        %v1428 = vunpack.c.0.s8 %v1427
        %v1429 = vlaneseq
        %v1430 = vshrl.u32 %v1429, 7
        %v1431 = vsub.s32 %v1428, %v1430
        %v1432 = vrot.slane %v1424, %v1431
        %v1434 = vunpack.c.l.s4 1983009808
        %v1435 = vunpack.c.0.s8 %v1434
        %v1436 = vlaneseq
        %v1437 = vshrl.u32 %v1436, 7
        %v1438 = vsub.s32 %v1435, %v1437
        %v1439 = vrot.slane %v1425, %v1438
        %v1440 = vcombine.low %v1416, %v1432
        %v1441 = vcombine.high %v1416, %v1432
        %v1443 = vunpack.c.l.s4 1934713408
        %v1444 = vunpack.c.0.s8 %v1443
        %v1445 = vlaneseq
        %v1446 = vshrl.u32 %v1445, 7
        %v1447 = vsub.s32 %v1444, %v1446
        %v1448 = vrot.slane %v1440, %v1447
        %v1450 = vunpack.c.l.s4 1934713408
        %v1451 = vunpack.c.0.s8 %v1450
        %v1452 = vlaneseq
        %v1453 = vshrl.u32 %v1452, 7
        %v1454 = vsub.s32 %v1451, %v1453
        %v1455 = vrot.slane %v1441, %v1454
        %v1456 = vcombine.low %v1423, %v1439
        %v1457 = vcombine.high %v1423, %v1439
        %v1459 = vunpack.c.l.s4 1934713408
        %v1460 = vunpack.c.0.s8 %v1459
        %v1461 = vlaneseq
        %v1462 = vshrl.u32 %v1461, 7
        %v1463 = vsub.s32 %v1460, %v1462
        %v1464 = vrot.slane %v1456, %v1463
        %v1466 = vunpack.c.l.s4 1934713408
        %v1467 = vunpack.c.0.s8 %v1466
        %v1468 = vlaneseq
        %v1469 = vshrl.u32 %v1468, 7
        %v1470 = vsub.s32 %v1467, %v1469
        %v1471 = vrot.slane %v1457, %v1470
        %v1472 = vcombine.high %v1448, 0.0
        %v1473 = vcombine.high %v1455, 0.0
        %v1474 = vcombine.high %v1464, 0.0
        %v1475 = vcombine.high %v1471, 0.0
        %v1476 = vcombine.low %v1448, %v1455
        %v1478 = vunpack.c.l.s4 1983009808
        %v1479 = vunpack.c.0.s8 %v1478
        %v1480 = vlaneseq
        %v1481 = vshrl.u32 %v1480, 7
        %v1482 = vsub.s32 %v1479, %v1481
        %v1483 = vrot.slane %v1476, %v1482
        %v1484 = vcombine.low %v1472, %v1473
        %v1486 = vunpack.c.l.s4 1983009808
        %v1487 = vunpack.c.0.s8 %v1486
        %v1488 = vlaneseq
        %v1489 = vshrl.u32 %v1488, 7
        %v1490 = vsub.s32 %v1487, %v1489
        %v1491 = vrot.slane %v1484, %v1490
        %v1492 = vcombine.low %v1464, %v1471
        %v1494 = vunpack.c.l.s4 1983009808
        %v1495 = vunpack.c.0.s8 %v1494
        %v1496 = vlaneseq
        %v1497 = vshrl.u32 %v1496, 7
        %v1498 = vsub.s32 %v1495, %v1497
        %v1499 = vrot.slane %v1492, %v1498
        %v1500 = vcombine.low %v1474, %v1475
        %v1502 = vunpack.c.l.s4 1983009808
        %v1503 = vunpack.c.0.s8 %v1502
        %v1504 = vlaneseq
        %v1505 = vshrl.u32 %v1504, 7
        %v1506 = vsub.s32 %v1503, %v1505
        %v1507 = vrot.slane %v1500, %v1506
        %v1508 = vcombine.low %v1483, %v1491
        %v1509 = vcombine.high %v1483, %v1491
        %v1511 = vunpack.c.l.s4 1934713408
        %v1512 = vunpack.c.0.s8 %v1511
        %v1513 = vlaneseq
        %v1514 = vshrl.u32 %v1513, 7
        %v1515 = vsub.s32 %v1512, %v1514
        %v1516 = vrot.slane %v1508, %v1515
        %v1518 = vunpack.c.l.s4 1934713408
        %v1519 = vunpack.c.0.s8 %v1518
        %v1520 = vlaneseq
        %v1521 = vshrl.u32 %v1520, 7
        %v1522 = vsub.s32 %v1519, %v1521
        %v1523 = vrot.slane %v1509, %v1522
        %v1524 = vcombine.low %v1499, %v1507
        %v1525 = vcombine.high %v1499, %v1507
        %v1527 = vunpack.c.l.s4 1934713408
        %v1528 = vunpack.c.0.s8 %v1527
        %v1529 = vlaneseq
        %v1530 = vshrl.u32 %v1529, 7
        %v1531 = vsub.s32 %v1528, %v1530
        %v1532 = vrot.slane %v1524, %v1531
        %v1534 = vunpack.c.l.s4 1934713408
        %v1535 = vunpack.c.0.s8 %v1534
        %v1536 = vlaneseq
        %v1537 = vshrl.u32 %v1536, 7
        %v1538 = vsub.s32 %v1535, %v1537
        %v1539 = vrot.slane %v1525, %v1538
        %v1540 = vcombine.low %v1516, %v1532
        %v1541 = vcombine.high %v1516, %v1532
        %v1542 = vcombine.low %v1523, %v1539
        %v1543 = vcombine.high %v1523, %v1539
        %v1544 = vcombine.low %v1197, %v1268
        %v1545 = vcombine.high %v1197, %v1268
        %v1547 = vunpack.c.l.s4 1983009808
        %v1548 = vunpack.c.0.s8 %v1547
        %v1549 = vlaneseq
        %v1550 = vshrl.u32 %v1549, 7
        %v1551 = vsub.s32 %v1548, %v1550
        %v1552 = vrot.slane %v1544, %v1551
        %v1554 = vunpack.c.l.s4 1983009808
        %v1555 = vunpack.c.0.s8 %v1554
        %v1556 = vlaneseq
        %v1557 = vshrl.u32 %v1556, 7
        %v1558 = vsub.s32 %v1555, %v1557
        %v1559 = vrot.slane %v1545, %v1558
        %v1560 = vcombine.low %v1199, %v1270
        %v1561 = vcombine.high %v1199, %v1270
        %v1563 = vunpack.c.l.s4 1983009808
        %v1564 = vunpack.c.0.s8 %v1563
        %v1565 = vlaneseq
        %v1566 = vshrl.u32 %v1565, 7
        %v1567 = vsub.s32 %v1564, %v1566
        %v1568 = vrot.slane %v1560, %v1567
        %v1570 = vunpack.c.l.s4 1983009808
        %v1571 = vunpack.c.0.s8 %v1570
        %v1572 = vlaneseq
        %v1573 = vshrl.u32 %v1572, 7
        %v1574 = vsub.s32 %v1571, %v1573
        %v1575 = vrot.slane %v1561, %v1574
        %v1576 = vcombine.low %v1552, %v1568
        %v1577 = vcombine.high %v1552, %v1568
        %v1579 = vunpack.c.l.s4 1934713408
        %v1580 = vunpack.c.0.s8 %v1579
        %v1581 = vlaneseq
        %v1582 = vshrl.u32 %v1581, 7
        %v1583 = vsub.s32 %v1580, %v1582
        %v1584 = vrot.slane %v1576, %v1583
        %v1586 = vunpack.c.l.s4 1934713408
        %v1587 = vunpack.c.0.s8 %v1586
        %v1588 = vlaneseq
        %v1589 = vshrl.u32 %v1588, 7
        %v1590 = vsub.s32 %v1587, %v1589
        %v1591 = vrot.slane %v1577, %v1590
        %v1592 = vcombine.low %v1559, %v1575
        %v1593 = vcombine.high %v1559, %v1575
        %v1595 = vunpack.c.l.s4 1934713408
        %v1596 = vunpack.c.0.s8 %v1595
        %v1597 = vlaneseq
        %v1598 = vshrl.u32 %v1597, 7
        %v1599 = vsub.s32 %v1596, %v1598
        %v1600 = vrot.slane %v1592, %v1599
        %v1602 = vunpack.c.l.s4 1934713408
        %v1603 = vunpack.c.0.s8 %v1602
        %v1604 = vlaneseq
        %v1605 = vshrl.u32 %v1604, 7
        %v1606 = vsub.s32 %v1603, %v1605
        %v1607 = vrot.slane %v1593, %v1606
        %v1608 = vcombine.high %v1584, 0.0
        %v1609 = vcombine.high %v1591, 0.0
        %v1610 = vcombine.high %v1600, 0.0
        %v1611 = vcombine.high %v1607, 0.0
        %v1612 = vcombine.low %v1584, %v1591
        %v1614 = vunpack.c.l.s4 1983009808
        %v1615 = vunpack.c.0.s8 %v1614
        %v1616 = vlaneseq
        %v1617 = vshrl.u32 %v1616, 7
        %v1618 = vsub.s32 %v1615, %v1617
        %v1619 = vrot.slane %v1612, %v1618
        %v1620 = vcombine.low %v1608, %v1609
        %v1622 = vunpack.c.l.s4 1983009808
        %v1623 = vunpack.c.0.s8 %v1622
        %v1624 = vlaneseq
        %v1625 = vshrl.u32 %v1624, 7
        %v1626 = vsub.s32 %v1623, %v1625
        %v1627 = vrot.slane %v1620, %v1626
        %v1628 = vcombine.low %v1600, %v1607
        %v1630 = vunpack.c.l.s4 1983009808
        %v1631 = vunpack.c.0.s8 %v1630
        %v1632 = vlaneseq
        %v1633 = vshrl.u32 %v1632, 7
        %v1634 = vsub.s32 %v1631, %v1633
        %v1635 = vrot.slane %v1628, %v1634
        %v1636 = vcombine.low %v1610, %v1611
        %v1638 = vunpack.c.l.s4 1983009808
        %v1639 = vunpack.c.0.s8 %v1638
        %v1640 = vlaneseq
        %v1641 = vshrl.u32 %v1640, 7
        %v1642 = vsub.s32 %v1639, %v1641
        %v1643 = vrot.slane %v1636, %v1642
        %v1644 = vcombine.low %v1619, %v1627
        %v1645 = vcombine.high %v1619, %v1627
        %v1647 = vunpack.c.l.s4 1934713408
        %v1648 = vunpack.c.0.s8 %v1647
        %v1649 = vlaneseq
        %v1650 = vshrl.u32 %v1649, 7
        %v1651 = vsub.s32 %v1648, %v1650
        %v1652 = vrot.slane %v1644, %v1651
        %v1654 = vunpack.c.l.s4 1934713408
        %v1655 = vunpack.c.0.s8 %v1654
        %v1656 = vlaneseq
        %v1657 = vshrl.u32 %v1656, 7
        %v1658 = vsub.s32 %v1655, %v1657
        %v1659 = vrot.slane %v1645, %v1658
        %v1660 = vcombine.low %v1635, %v1643
        %v1661 = vcombine.high %v1635, %v1643
        %v1663 = vunpack.c.l.s4 1934713408
        %v1664 = vunpack.c.0.s8 %v1663
        %v1665 = vlaneseq
        %v1666 = vshrl.u32 %v1665, 7
        %v1667 = vsub.s32 %v1664, %v1666
        %v1668 = vrot.slane %v1660, %v1667
        %v1670 = vunpack.c.l.s4 1934713408
        %v1671 = vunpack.c.0.s8 %v1670
        %v1672 = vlaneseq
        %v1673 = vshrl.u32 %v1672, 7
        %v1674 = vsub.s32 %v1671, %v1673
        %v1675 = vrot.slane %v1661, %v1674
        %v1676 = vcombine.low %v1652, %v1668
        %v1677 = vcombine.high %v1652, %v1668
        %v1678 = vcombine.low %v1659, %v1675
        %v1679 = vcombine.high %v1659, %v1675
        %1680 = vmatprep.subr.mxu0 0.0
        %1681 = vmatpush1.xpose.msra.mxu0 0.0
        %1682 = vmatprep.subr.mxu0 0.0
        %1683 = vmatpush1.xpose.msra.mxu0 0.0
        %1684 = vmatprep.subr.mxu0 0.0
        %1685 = vmatpush1.xpose.msra.mxu0 0.0
        %1686 = vmatprep.subr.mxu0 0.0
        %1687 = vmatpush1.xpose.msra.mxu0 0.0
        %1688 = vmatprep.subr.mxu0 0.0
        %1689 = vmatpush1.xpose.msra.mxu0 0.0
        %1690 = vmatprep.subr.mxu0 0.0
        %1691 = vmatpush1.xpose.msra.mxu0 0.0
        %1692 = vmatprep.subr.mxu0 0.0
        %1693 = vmatpush1.xpose.msra.mxu0 0.0
        %1694 = vmatprep.subr.mxu0 0.0
        %1695 = vmatpush1.xpose.msra.mxu0 0.0
        %1696 = vmatprep.subr.mxu0 0.0
        %1697 = vmatpush1.xpose.msra.mxu0 0.0
        %1698 = vmatprep.subr.mxu0 0.0
        %1699 = vmatpush1.xpose.msra.mxu0 0.0
        %1700 = vmatprep.subr.mxu0 0.0
        %1701 = vmatpush1.xpose.msra.mxu0 0.0
        %1702 = vmatprep.subr.mxu0 0.0
        %1703 = vmatpush1.xpose.msra.mxu0 0.0
        %1704 = vmatprep.subr.mxu0 0.0
        %1705 = vmatpush1.xpose.msra.mxu0 0.0
        %1706 = vmatprep.subr.mxu0 0.0
        %1707 = vmatpush1.xpose.msra.mxu0 0.0
        %1708 = vmatprep.subr.mxu0 0.0
        %1709 = vmatpush1.xpose.msra.mxu0 0.0
        %1710 = vmatprep.subr.mxu0 0.0
        %1711 = vmatpush1.xpose.msra.mxu0 %v1540
        %1712 = vmatprep.subr.mxu0 0.0
        %1713 = vmatpush2.xpose.msra.mxu0 0.0
        %1714 = vmatprep.subr.mxu0 0.0
        %1715 = vmatpush2.xpose.msra.mxu0 0.0
        %1716 = vmatprep.subr.mxu0 0.0
        %1717 = vmatpush2.xpose.msra.mxu0 0.0
        %1718 = vmatprep.subr.mxu0 0.0
        %1719 = vmatpush2.xpose.msra.mxu0 0.0
        %1720 = vmatprep.subr.mxu0 0.0
        %1721 = vmatpush2.xpose.msra.mxu0 0.0
        %1722 = vmatprep.subr.mxu0 0.0
        %1723 = vmatpush2.xpose.msra.mxu0 0.0
        %1724 = vmatprep.subr.mxu0 0.0
        %1725 = vmatpush2.xpose.msra.mxu0 0.0
        %1726 = vmatprep.subr.mxu0 0.0
        %1727 = vmatpush2.xpose.msra.mxu0 0.0
        %1728 = vmatprep.subr.mxu0 0.0
        %1729 = vmatpush2.xpose.msra.mxu0 0.0
        %1730 = vmatprep.subr.mxu0 0.0
        %1731 = vmatpush2.xpose.msra.mxu0 0.0
        %1732 = vmatprep.subr.mxu0 0.0
        %1733 = vmatpush2.xpose.msra.mxu0 0.0
        %1734 = vmatprep.subr.mxu0 0.0
        %1735 = vmatpush2.xpose.msra.mxu0 0.0
        %1736 = vmatprep.subr.mxu0 0.0
        %1737 = vmatpush2.xpose.msra.mxu0 0.0
        %1738 = vmatprep.subr.mxu0 0.0
        %1739 = vmatpush2.xpose.msra.mxu0 0.0
        %1740 = vmatprep.subr.mxu0 0.0
        %1741 = vmatpush2.xpose.msra.mxu0 0.0
        %1742 = vmatprep.subr.mxu0 0.0
        %1743 = vmatpush2.xpose.msra.mxu0 0.0
        %1744 = vmatprep.mubr.f32.mxu0 0.0
        %1745 = vmatmul.mubr.f32.gmra.mxu0 %v1404
        %v1746 = vpop.f32.mrf.mxu0
        %v1747 = vadd.f32 0.0, %v1746
        %v1748 = vpop.f32.mrf.mxu0
        %1749 = vdwg.mxu0
        %1750 = vmatprep.subr.mxu0 0.0
        %1751 = vmatpush1.xpose.msra.mxu0 0.0
        %1752 = vmatprep.subr.mxu0 0.0
        %1753 = vmatpush1.xpose.msra.mxu0 0.0
        %1754 = vmatprep.subr.mxu0 0.0
        %1755 = vmatpush1.xpose.msra.mxu0 0.0
        %1756 = vmatprep.subr.mxu0 0.0
        %1757 = vmatpush1.xpose.msra.mxu0 0.0
        %1758 = vmatprep.subr.mxu0 0.0
        %1759 = vmatpush1.xpose.msra.mxu0 0.0
        %1760 = vmatprep.subr.mxu0 0.0
        %1761 = vmatpush1.xpose.msra.mxu0 0.0
        %1762 = vmatprep.subr.mxu0 0.0
        %1763 = vmatpush1.xpose.msra.mxu0 0.0
        %1764 = vmatprep.subr.mxu0 0.0
        %1765 = vmatpush1.xpose.msra.mxu0 0.0
        %1766 = vmatprep.subr.mxu0 0.0
        %1767 = vmatpush1.xpose.msra.mxu0 0.0
        %1768 = vmatprep.subr.mxu0 0.0
        %1769 = vmatpush1.xpose.msra.mxu0 0.0
        %1770 = vmatprep.subr.mxu0 0.0
        %1771 = vmatpush1.xpose.msra.mxu0 0.0
        %1772 = vmatprep.subr.mxu0 0.0
        %1773 = vmatpush1.xpose.msra.mxu0 0.0
        %1774 = vmatprep.subr.mxu0 0.0
        %1775 = vmatpush1.xpose.msra.mxu0 0.0
        %1776 = vmatprep.subr.mxu0 0.0
        %1777 = vmatpush1.xpose.msra.mxu0 0.0
        %1778 = vmatprep.subr.mxu0 0.0
        %1779 = vmatpush1.xpose.msra.mxu0 0.0
        %1780 = vmatprep.subr.mxu0 0.0
        %1781 = vmatpush1.xpose.msra.mxu0 %v1541
        %1782 = vmatprep.subr.mxu0 0.0
        %1783 = vmatpush2.xpose.msra.mxu0 0.0
        %1784 = vmatprep.subr.mxu0 0.0
        %1785 = vmatpush2.xpose.msra.mxu0 0.0
        %1786 = vmatprep.subr.mxu0 0.0
        %1787 = vmatpush2.xpose.msra.mxu0 0.0
        %1788 = vmatprep.subr.mxu0 0.0
        %1789 = vmatpush2.xpose.msra.mxu0 0.0
        %1790 = vmatprep.subr.mxu0 0.0
        %1791 = vmatpush2.xpose.msra.mxu0 0.0
        %1792 = vmatprep.subr.mxu0 0.0
        %1793 = vmatpush2.xpose.msra.mxu0 0.0
        %1794 = vmatprep.subr.mxu0 0.0
        %1795 = vmatpush2.xpose.msra.mxu0 0.0
        %1796 = vmatprep.subr.mxu0 0.0
        %1797 = vmatpush2.xpose.msra.mxu0 0.0
        %1798 = vmatprep.subr.mxu0 0.0
        %1799 = vmatpush2.xpose.msra.mxu0 0.0
        %1800 = vmatprep.subr.mxu0 0.0
        %1801 = vmatpush2.xpose.msra.mxu0 0.0
        %1802 = vmatprep.subr.mxu0 0.0
        %1803 = vmatpush2.xpose.msra.mxu0 0.0
        %1804 = vmatprep.subr.mxu0 0.0
        %1805 = vmatpush2.xpose.msra.mxu0 0.0
        %1806 = vmatprep.subr.mxu0 0.0
        %1807 = vmatpush2.xpose.msra.mxu0 0.0
        %1808 = vmatprep.subr.mxu0 0.0
        %1809 = vmatpush2.xpose.msra.mxu0 0.0
        %1810 = vmatprep.subr.mxu0 0.0
        %1811 = vmatpush2.xpose.msra.mxu0 0.0
        %1812 = vmatprep.subr.mxu0 0.0
        %1813 = vmatpush2.xpose.msra.mxu0 0.0
        %1814 = vmatprep.mubr.f32.mxu0 0.0
        %1815 = vmatmul.mubr.f32.gmra.mxu0 %v1405
        %v1816 = vpop.f32.mrf.mxu0
        %v1817 = vadd.f32 0.0, %v1816
        %v1818 = vpop.f32.mrf.mxu0
        %1819 = vdwg.mxu0
        %1820 = vmatprep.subr.mxu0 0.0
        %1821 = vmatpush1.xpose.msra.mxu0 0.0
        %1822 = vmatprep.subr.mxu0 0.0
        %1823 = vmatpush1.xpose.msra.mxu0 0.0
        %1824 = vmatprep.subr.mxu0 0.0
        %1825 = vmatpush1.xpose.msra.mxu0 0.0
        %1826 = vmatprep.subr.mxu0 0.0
        %1827 = vmatpush1.xpose.msra.mxu0 0.0
        %1828 = vmatprep.subr.mxu0 0.0
        %1829 = vmatpush1.xpose.msra.mxu0 0.0
        %1830 = vmatprep.subr.mxu0 0.0
        %1831 = vmatpush1.xpose.msra.mxu0 0.0
        %1832 = vmatprep.subr.mxu0 0.0
        %1833 = vmatpush1.xpose.msra.mxu0 0.0
        %1834 = vmatprep.subr.mxu0 0.0
        %1835 = vmatpush1.xpose.msra.mxu0 0.0
        %1836 = vmatprep.subr.mxu0 0.0
        %1837 = vmatpush1.xpose.msra.mxu0 0.0
        %1838 = vmatprep.subr.mxu0 0.0
        %1839 = vmatpush1.xpose.msra.mxu0 0.0
        %1840 = vmatprep.subr.mxu0 0.0
        %1841 = vmatpush1.xpose.msra.mxu0 0.0
        %1842 = vmatprep.subr.mxu0 0.0
        %1843 = vmatpush1.xpose.msra.mxu0 0.0
        %1844 = vmatprep.subr.mxu0 0.0
        %1845 = vmatpush1.xpose.msra.mxu0 0.0
        %1846 = vmatprep.subr.mxu0 0.0
        %1847 = vmatpush1.xpose.msra.mxu0 0.0
        %1848 = vmatprep.subr.mxu0 0.0
        %1849 = vmatpush1.xpose.msra.mxu0 0.0
        %1850 = vmatprep.subr.mxu0 0.0
        %1851 = vmatpush1.xpose.msra.mxu0 %v1542
        %1852 = vmatprep.subr.mxu0 0.0
        %1853 = vmatpush2.xpose.msra.mxu0 0.0
        %1854 = vmatprep.subr.mxu0 0.0
        %1855 = vmatpush2.xpose.msra.mxu0 0.0
        %1856 = vmatprep.subr.mxu0 0.0
        %1857 = vmatpush2.xpose.msra.mxu0 0.0
        %1858 = vmatprep.subr.mxu0 0.0
        %1859 = vmatpush2.xpose.msra.mxu0 0.0
        %1860 = vmatprep.subr.mxu0 0.0
        %1861 = vmatpush2.xpose.msra.mxu0 0.0
        %1862 = vmatprep.subr.mxu0 0.0
        %1863 = vmatpush2.xpose.msra.mxu0 0.0
        %1864 = vmatprep.subr.mxu0 0.0
        %1865 = vmatpush2.xpose.msra.mxu0 0.0
        %1866 = vmatprep.subr.mxu0 0.0
        %1867 = vmatpush2.xpose.msra.mxu0 0.0
        %1868 = vmatprep.subr.mxu0 0.0
        %1869 = vmatpush2.xpose.msra.mxu0 0.0
        %1870 = vmatprep.subr.mxu0 0.0
        %1871 = vmatpush2.xpose.msra.mxu0 0.0
        %1872 = vmatprep.subr.mxu0 0.0
        %1873 = vmatpush2.xpose.msra.mxu0 0.0
        %1874 = vmatprep.subr.mxu0 0.0
        %1875 = vmatpush2.xpose.msra.mxu0 0.0
        %1876 = vmatprep.subr.mxu0 0.0
        %1877 = vmatpush2.xpose.msra.mxu0 0.0
        %1878 = vmatprep.subr.mxu0 0.0
        %1879 = vmatpush2.xpose.msra.mxu0 0.0
        %1880 = vmatprep.subr.mxu0 0.0
        %1881 = vmatpush2.xpose.msra.mxu0 0.0
        %1882 = vmatprep.subr.mxu0 0.0
        %1883 = vmatpush2.xpose.msra.mxu0 0.0
        %1884 = vmatprep.mubr.f32.mxu0 0.0
        %1885 = vmatmul.mubr.f32.gmra.mxu0 %v1406
        %v1886 = vpop.f32.mrf.mxu0
        %v1887 = vadd.f32 0.0, %v1886
        %v1888 = vpop.f32.mrf.mxu0
        %1889 = vdwg.mxu0
        %1890 = vmatprep.subr.mxu0 0.0
        %1891 = vmatpush1.xpose.msra.mxu0 0.0
        %1892 = vmatprep.subr.mxu0 0.0
        %1893 = vmatpush1.xpose.msra.mxu0 0.0
        %1894 = vmatprep.subr.mxu0 0.0
        %1895 = vmatpush1.xpose.msra.mxu0 0.0
        %1896 = vmatprep.subr.mxu0 0.0
        %1897 = vmatpush1.xpose.msra.mxu0 0.0
        %1898 = vmatprep.subr.mxu0 0.0
        %1899 = vmatpush1.xpose.msra.mxu0 0.0
        %1900 = vmatprep.subr.mxu0 0.0
        %1901 = vmatpush1.xpose.msra.mxu0 0.0
        %1902 = vmatprep.subr.mxu0 0.0
        %1903 = vmatpush1.xpose.msra.mxu0 0.0
        %1904 = vmatprep.subr.mxu0 0.0
        %1905 = vmatpush1.xpose.msra.mxu0 0.0
        %1906 = vmatprep.subr.mxu0 0.0
        %1907 = vmatpush1.xpose.msra.mxu0 0.0
        %1908 = vmatprep.subr.mxu0 0.0
        %1909 = vmatpush1.xpose.msra.mxu0 0.0
        %1910 = vmatprep.subr.mxu0 0.0
        %1911 = vmatpush1.xpose.msra.mxu0 0.0
        %1912 = vmatprep.subr.mxu0 0.0
        %1913 = vmatpush1.xpose.msra.mxu0 0.0
        %1914 = vmatprep.subr.mxu0 0.0
        %1915 = vmatpush1.xpose.msra.mxu0 0.0
        %1916 = vmatprep.subr.mxu0 0.0
        %1917 = vmatpush1.xpose.msra.mxu0 0.0
        %1918 = vmatprep.subr.mxu0 0.0
        %1919 = vmatpush1.xpose.msra.mxu0 0.0
        %1920 = vmatprep.subr.mxu0 0.0
        %1921 = vmatpush1.xpose.msra.mxu0 %v1543
        %1922 = vmatprep.subr.mxu0 0.0
        %1923 = vmatpush2.xpose.msra.mxu0 0.0
        %1924 = vmatprep.subr.mxu0 0.0
        %1925 = vmatpush2.xpose.msra.mxu0 0.0
        %1926 = vmatprep.subr.mxu0 0.0
        %1927 = vmatpush2.xpose.msra.mxu0 0.0
        %1928 = vmatprep.subr.mxu0 0.0
        %1929 = vmatpush2.xpose.msra.mxu0 0.0
        %1930 = vmatprep.subr.mxu0 0.0
        %1931 = vmatpush2.xpose.msra.mxu0 0.0
        %1932 = vmatprep.subr.mxu0 0.0
        %1933 = vmatpush2.xpose.msra.mxu0 0.0
        %1934 = vmatprep.subr.mxu0 0.0
        %1935 = vmatpush2.xpose.msra.mxu0 0.0
        %1936 = vmatprep.subr.mxu0 0.0
        %1937 = vmatpush2.xpose.msra.mxu0 0.0
        %1938 = vmatprep.subr.mxu0 0.0
        %1939 = vmatpush2.xpose.msra.mxu0 0.0
        %1940 = vmatprep.subr.mxu0 0.0
        %1941 = vmatpush2.xpose.msra.mxu0 0.0
        %1942 = vmatprep.subr.mxu0 0.0
        %1943 = vmatpush2.xpose.msra.mxu0 0.0
        %1944 = vmatprep.subr.mxu0 0.0
        %1945 = vmatpush2.xpose.msra.mxu0 0.0
        %1946 = vmatprep.subr.mxu0 0.0
        %1947 = vmatpush2.xpose.msra.mxu0 0.0
        %1948 = vmatprep.subr.mxu0 0.0
        %1949 = vmatpush2.xpose.msra.mxu0 0.0
        %1950 = vmatprep.subr.mxu0 0.0
        %1951 = vmatpush2.xpose.msra.mxu0 0.0
        %1952 = vmatprep.subr.mxu0 0.0
        %1953 = vmatpush2.xpose.msra.mxu0 0.0
        %1954 = vmatprep.mubr.f32.mxu0 0.0
        %1955 = vmatmul.mubr.f32.gmra.mxu0 %v1407
        %v1956 = vpop.f32.mrf.mxu0
        %v1957 = vadd.f32 0.0, %v1956
        %v1958 = vpop.f32.mrf.mxu0
        %1959 = vdwg.mxu0
        %vm1960 = vcmask 64512
        %v1961 = vsel %vm1960, %v1747, -inf
        %1962 = vmax.xlane.f32.xlu0 %v1961
        %v1963 = vpop.xlane.xlu0 %1962
        %v1964 = vsel %vm1960, %v1817, -inf
        %1965 = vmax.xlane.f32.xlu0 %v1964
        %v1966 = vpop.xlane.xlu0 %1965
        %v1967 = vsel %vm1960, %v1887, -inf
        %1968 = vmax.xlane.f32.xlu0 %v1967
        %v1969 = vpop.xlane.xlu0 %1968
        %v1970 = vsel %vm1960, %v1957, -inf
        %1971 = vmax.xlane.f32.xlu0 %v1970
        %v1972 = vpop.xlane.xlu0 %1971
        %v1973 = vsub.f32 %v1747, %v1963
        %v1974 = vsub.f32 %v1817, %v1966
        %v1975 = vsub.f32 %v1887, %v1969
        %v1976 = vsub.f32 %v1957, %v1972
        %v1977 = vmul.f32 %v1973, 1.442695
        %v1978 = vpow.pop %v1977
        %v1979 = vmul.f32 %v1974, 1.442695
        %v1980 = vpow.pop %v1979
        %v1981 = vmul.f32 %v1975, 1.442695
        %v1982 = vpow.pop %v1981
        %v1983 = vmul.f32 %v1976, 1.442695
        %v1984 = vpow.pop %v1983
        %v1985 = vsel %vm1960, %v1978, 0.0
        %1986 = vadd.xlane.f32.xlu0 %v1985
        %v1987 = vpop.xlane.xlu0 %1986
        %v1988 = vsel %vm1960, %v1980, 0.0
        %1989 = vadd.xlane.f32.xlu0 %v1988
        %v1990 = vpop.xlane.xlu0 %1989
        %v1991 = vsel %vm1960, %v1982, 0.0
        %1992 = vadd.xlane.f32.xlu0 %v1991
        %v1993 = vpop.xlane.xlu0 %1992
        %v1994 = vsel %vm1960, %v1984, 0.0
        %1995 = vadd.xlane.f32.xlu0 %v1994
        %v1996 = vpop.xlane.xlu0 %1995
        %v1997 = vrcp.pop %v1987
        %v1998 = vrcp.pop %v1990
        %v1999 = vrcp.pop %v1993
        %v2000 = vrcp.pop %v1996
        %v2001 = vmul.f32 %v1987, %v1997
        %v2002 = vmul.f32 %v1990, %v1998
        %v2003 = vmul.f32 %v1993, %v1999
        %v2004 = vmul.f32 %v1996, %v2000
        %v2005 = vsub.f32 2.0, %v2001
        %v2006 = vsub.f32 2.0, %v2002
        %v2007 = vsub.f32 2.0, %v2003
        %v2008 = vsub.f32 2.0, %v2004
        %v2009 = vmul.f32 %v1997, %v2005
        %v2010 = vmul.f32 %v1998, %v2006
        %v2011 = vmul.f32 %v1999, %v2007
        %v2012 = vmul.f32 %v2000, %v2008
        %v2013 = vmul.f32 %v1978, %v2009
        %v2014 = vmul.f32 %v1980, %v2010
        %v2015 = vmul.f32 %v1982, %v2011
        %v2016 = vmul.f32 %v1984, %v2012
        %v2018 = vsel %vm1960, %v2013, 0
        %2020 = vmatprep.subr.mxu0 0.0
        %2021 = vmatpush1.msra.mxu0 0.0
        %2022 = vmatprep.subr.mxu0 0.0
        %2023 = vmatpush1.msra.mxu0 0.0
        %2024 = vmatprep.subr.mxu0 0.0
        %2025 = vmatpush1.msra.mxu0 0.0
        %2026 = vmatprep.subr.mxu0 0.0
        %2027 = vmatpush1.msra.mxu0 0.0
        %2028 = vmatprep.subr.mxu0 0.0
        %2029 = vmatpush1.msra.mxu0 0.0
        %2030 = vmatprep.subr.mxu0 0.0
        %2031 = vmatpush1.msra.mxu0 0.0
        %2032 = vmatprep.subr.mxu0 0.0
        %2033 = vmatpush1.msra.mxu0 0.0
        %2034 = vmatprep.subr.mxu0 0.0
        %2035 = vmatpush1.msra.mxu0 0.0
        %2036 = vmatprep.subr.mxu0 0.0
        %2037 = vmatpush1.msra.mxu0 0.0
        %2038 = vmatprep.subr.mxu0 0.0
        %2039 = vmatpush1.msra.mxu0 0.0
        %2040 = vmatprep.subr.mxu0 0.0
        %2041 = vmatpush1.msra.mxu0 0.0
        %2042 = vmatprep.subr.mxu0 0.0
        %2043 = vmatpush1.msra.mxu0 0.0
        %2044 = vmatprep.subr.mxu0 0.0
        %2045 = vmatpush1.msra.mxu0 0.0
        %2046 = vmatprep.subr.mxu0 0.0
        %2047 = vmatpush1.msra.mxu0 0.0
        %2048 = vmatprep.subr.mxu0 0.0
        %2049 = vmatpush1.msra.mxu0 0.0
        %2050 = vmatprep.subr.mxu0 0.0
        %2051 = vmatpush1.msra.mxu0 %v1676
        %2052 = vmatprep.subr.mxu0 0.0
        %2053 = vmatpush2.msra.mxu0 0.0
        %2054 = vmatprep.subr.mxu0 0.0
        %2055 = vmatpush2.msra.mxu0 0.0
        %2056 = vmatprep.subr.mxu0 0.0
        %2057 = vmatpush2.msra.mxu0 0.0
        %2058 = vmatprep.subr.mxu0 0.0
        %2059 = vmatpush2.msra.mxu0 0.0
        %2060 = vmatprep.subr.mxu0 0.0
        %2061 = vmatpush2.msra.mxu0 0.0
        %2062 = vmatprep.subr.mxu0 0.0
        %2063 = vmatpush2.msra.mxu0 0.0
        %2064 = vmatprep.subr.mxu0 0.0
        %2065 = vmatpush2.msra.mxu0 0.0
        %2066 = vmatprep.subr.mxu0 0.0
        %2067 = vmatpush2.msra.mxu0 0.0
        %2068 = vmatprep.subr.mxu0 0.0
        %2069 = vmatpush2.msra.mxu0 0.0
        %2070 = vmatprep.subr.mxu0 0.0
        %2071 = vmatpush2.msra.mxu0 0.0
        %2072 = vmatprep.subr.mxu0 0.0
        %2073 = vmatpush2.msra.mxu0 0.0
        %2074 = vmatprep.subr.mxu0 0.0
        %2075 = vmatpush2.msra.mxu0 0.0
        %2076 = vmatprep.subr.mxu0 0.0
        %2077 = vmatpush2.msra.mxu0 0.0
        %2078 = vmatprep.subr.mxu0 0.0
        %2079 = vmatpush2.msra.mxu0 0.0
        %2080 = vmatprep.subr.mxu0 0.0
        %2081 = vmatpush2.msra.mxu0 0.0
        %2082 = vmatprep.subr.mxu0 0.0
        %2083 = vmatpush2.msra.mxu0 0.0
        %2084 = vmatprep.mubr.f32.mxu0 0.0
        %2085 = vmatmul.mubr.f32.gmra.mxu0 %v2018
        %v2086 = vpop.f32.mrf.mxu0
        %v2087 = vadd.f32 0.0, %v2086
        %v2088 = vpop.f32.mrf.mxu0
        %2089 = vdwg.mxu0
        %v2091 = vsel %vm1960, %v2014, 0
        %2093 = vmatprep.subr.mxu0 0.0
        %2094 = vmatpush1.msra.mxu0 0.0
        %2095 = vmatprep.subr.mxu0 0.0
        %2096 = vmatpush1.msra.mxu0 0.0
        %2097 = vmatprep.subr.mxu0 0.0
        %2098 = vmatpush1.msra.mxu0 0.0
        %2099 = vmatprep.subr.mxu0 0.0
        %2100 = vmatpush1.msra.mxu0 0.0
        %2101 = vmatprep.subr.mxu0 0.0
        %2102 = vmatpush1.msra.mxu0 0.0
        %2103 = vmatprep.subr.mxu0 0.0
        %2104 = vmatpush1.msra.mxu0 0.0
        %2105 = vmatprep.subr.mxu0 0.0
        %2106 = vmatpush1.msra.mxu0 0.0
        %2107 = vmatprep.subr.mxu0 0.0
        %2108 = vmatpush1.msra.mxu0 0.0
        %2109 = vmatprep.subr.mxu0 0.0
        %2110 = vmatpush1.msra.mxu0 0.0
        %2111 = vmatprep.subr.mxu0 0.0
        %2112 = vmatpush1.msra.mxu0 0.0
        %2113 = vmatprep.subr.mxu0 0.0
        %2114 = vmatpush1.msra.mxu0 0.0
        %2115 = vmatprep.subr.mxu0 0.0
        %2116 = vmatpush1.msra.mxu0 0.0
        %2117 = vmatprep.subr.mxu0 0.0
        %2118 = vmatpush1.msra.mxu0 0.0
        %2119 = vmatprep.subr.mxu0 0.0
        %2120 = vmatpush1.msra.mxu0 0.0
        %2121 = vmatprep.subr.mxu0 0.0
        %2122 = vmatpush1.msra.mxu0 0.0
        %2123 = vmatprep.subr.mxu0 0.0
        %2124 = vmatpush1.msra.mxu0 %v1677
        %2125 = vmatprep.subr.mxu0 0.0
        %2126 = vmatpush2.msra.mxu0 0.0
        %2127 = vmatprep.subr.mxu0 0.0
        %2128 = vmatpush2.msra.mxu0 0.0
        %2129 = vmatprep.subr.mxu0 0.0
        %2130 = vmatpush2.msra.mxu0 0.0
        %2131 = vmatprep.subr.mxu0 0.0
        %2132 = vmatpush2.msra.mxu0 0.0
        %2133 = vmatprep.subr.mxu0 0.0
        %2134 = vmatpush2.msra.mxu0 0.0
        %2135 = vmatprep.subr.mxu0 0.0
        %2136 = vmatpush2.msra.mxu0 0.0
        %2137 = vmatprep.subr.mxu0 0.0
        %2138 = vmatpush2.msra.mxu0 0.0
        %2139 = vmatprep.subr.mxu0 0.0
        %2140 = vmatpush2.msra.mxu0 0.0
        %2141 = vmatprep.subr.mxu0 0.0
        %2142 = vmatpush2.msra.mxu0 0.0
        %2143 = vmatprep.subr.mxu0 0.0
        %2144 = vmatpush2.msra.mxu0 0.0
        %2145 = vmatprep.subr.mxu0 0.0
        %2146 = vmatpush2.msra.mxu0 0.0
        %2147 = vmatprep.subr.mxu0 0.0
        %2148 = vmatpush2.msra.mxu0 0.0
        %2149 = vmatprep.subr.mxu0 0.0
        %2150 = vmatpush2.msra.mxu0 0.0
        %2151 = vmatprep.subr.mxu0 0.0
        %2152 = vmatpush2.msra.mxu0 0.0
        %2153 = vmatprep.subr.mxu0 0.0
        %2154 = vmatpush2.msra.mxu0 0.0
        %2155 = vmatprep.subr.mxu0 0.0
        %2156 = vmatpush2.msra.mxu0 0.0
        %2157 = vmatprep.mubr.f32.mxu0 0.0
        %2158 = vmatmul.mubr.f32.gmra.mxu0 %v2091
        %v2159 = vpop.f32.mrf.mxu0
        %v2160 = vadd.f32 0.0, %v2159
        %v2161 = vpop.f32.mrf.mxu0
        %2162 = vdwg.mxu0
        %v2164 = vsel %vm1960, %v2015, 0
        %2166 = vmatprep.subr.mxu0 0.0
        %2167 = vmatpush1.msra.mxu0 0.0
        %2168 = vmatprep.subr.mxu0 0.0
        %2169 = vmatpush1.msra.mxu0 0.0
        %2170 = vmatprep.subr.mxu0 0.0
        %2171 = vmatpush1.msra.mxu0 0.0
        %2172 = vmatprep.subr.mxu0 0.0
        %2173 = vmatpush1.msra.mxu0 0.0
        %2174 = vmatprep.subr.mxu0 0.0
        %2175 = vmatpush1.msra.mxu0 0.0
        %2176 = vmatprep.subr.mxu0 0.0
        %2177 = vmatpush1.msra.mxu0 0.0
        %2178 = vmatprep.subr.mxu0 0.0
        %2179 = vmatpush1.msra.mxu0 0.0
        %2180 = vmatprep.subr.mxu0 0.0
        %2181 = vmatpush1.msra.mxu0 0.0
        %2182 = vmatprep.subr.mxu0 0.0
        %2183 = vmatpush1.msra.mxu0 0.0
        %2184 = vmatprep.subr.mxu0 0.0
        %2185 = vmatpush1.msra.mxu0 0.0
        %2186 = vmatprep.subr.mxu0 0.0
        %2187 = vmatpush1.msra.mxu0 0.0
        %2188 = vmatprep.subr.mxu0 0.0
        %2189 = vmatpush1.msra.mxu0 0.0
        %2190 = vmatprep.subr.mxu0 0.0
        %2191 = vmatpush1.msra.mxu0 0.0
        %2192 = vmatprep.subr.mxu0 0.0
        %2193 = vmatpush1.msra.mxu0 0.0
        %2194 = vmatprep.subr.mxu0 0.0
        %2195 = vmatpush1.msra.mxu0 0.0
        %2196 = vmatprep.subr.mxu0 0.0
        %2197 = vmatpush1.msra.mxu0 %v1678
        %2198 = vmatprep.subr.mxu0 0.0
        %2199 = vmatpush2.msra.mxu0 0.0
        %2200 = vmatprep.subr.mxu0 0.0
        %2201 = vmatpush2.msra.mxu0 0.0
        %2202 = vmatprep.subr.mxu0 0.0
        %2203 = vmatpush2.msra.mxu0 0.0
        %2204 = vmatprep.subr.mxu0 0.0
        %2205 = vmatpush2.msra.mxu0 0.0
        %2206 = vmatprep.subr.mxu0 0.0
        %2207 = vmatpush2.msra.mxu0 0.0
        %2208 = vmatprep.subr.mxu0 0.0
        %2209 = vmatpush2.msra.mxu0 0.0
        %2210 = vmatprep.subr.mxu0 0.0
        %2211 = vmatpush2.msra.mxu0 0.0
        %2212 = vmatprep.subr.mxu0 0.0
        %2213 = vmatpush2.msra.mxu0 0.0
        %2214 = vmatprep.subr.mxu0 0.0
        %2215 = vmatpush2.msra.mxu0 0.0
        %2216 = vmatprep.subr.mxu0 0.0
        %2217 = vmatpush2.msra.mxu0 0.0
        %2218 = vmatprep.subr.mxu0 0.0
        %2219 = vmatpush2.msra.mxu0 0.0
        %2220 = vmatprep.subr.mxu0 0.0
        %2221 = vmatpush2.msra.mxu0 0.0
        %2222 = vmatprep.subr.mxu0 0.0
        %2223 = vmatpush2.msra.mxu0 0.0
        %2224 = vmatprep.subr.mxu0 0.0
        %2225 = vmatpush2.msra.mxu0 0.0
        %2226 = vmatprep.subr.mxu0 0.0
        %2227 = vmatpush2.msra.mxu0 0.0
        %2228 = vmatprep.subr.mxu0 0.0
        %2229 = vmatpush2.msra.mxu0 0.0
        %2230 = vmatprep.mubr.f32.mxu0 0.0
        %2231 = vmatmul.mubr.f32.gmra.mxu0 %v2164
        %v2232 = vpop.f32.mrf.mxu0
        %v2233 = vadd.f32 0.0, %v2232
        %v2234 = vpop.f32.mrf.mxu0
        %2235 = vdwg.mxu0
        %v2237 = vsel %vm1960, %v2016, 0
        %2239 = vmatprep.subr.mxu0 0.0
        %2240 = vmatpush1.msra.mxu0 0.0
        %2241 = vmatprep.subr.mxu0 0.0
        %2242 = vmatpush1.msra.mxu0 0.0
        %2243 = vmatprep.subr.mxu0 0.0
        %2244 = vmatpush1.msra.mxu0 0.0
        %2245 = vmatprep.subr.mxu0 0.0
        %2246 = vmatpush1.msra.mxu0 0.0
        %2247 = vmatprep.subr.mxu0 0.0
        %2248 = vmatpush1.msra.mxu0 0.0
        %2249 = vmatprep.subr.mxu0 0.0
        %2250 = vmatpush1.msra.mxu0 0.0
        %2251 = vmatprep.subr.mxu0 0.0
        %2252 = vmatpush1.msra.mxu0 0.0
        %2253 = vmatprep.subr.mxu0 0.0
        %2254 = vmatpush1.msra.mxu0 0.0
        %2255 = vmatprep.subr.mxu0 0.0
        %2256 = vmatpush1.msra.mxu0 0.0
        %2257 = vmatprep.subr.mxu0 0.0
        %2258 = vmatpush1.msra.mxu0 0.0
        %2259 = vmatprep.subr.mxu0 0.0
        %2260 = vmatpush1.msra.mxu0 0.0
        %2261 = vmatprep.subr.mxu0 0.0
        %2262 = vmatpush1.msra.mxu0 0.0
        %2263 = vmatprep.subr.mxu0 0.0
        %2264 = vmatpush1.msra.mxu0 0.0
        %2265 = vmatprep.subr.mxu0 0.0
        %2266 = vmatpush1.msra.mxu0 0.0
        %2267 = vmatprep.subr.mxu0 0.0
        %2268 = vmatpush1.msra.mxu0 0.0
        %2269 = vmatprep.subr.mxu0 0.0
        %2270 = vmatpush1.msra.mxu0 %v1679
        %2271 = vmatprep.subr.mxu0 0.0
        %2272 = vmatpush2.msra.mxu0 0.0
        %2273 = vmatprep.subr.mxu0 0.0
        %2274 = vmatpush2.msra.mxu0 0.0
        %2275 = vmatprep.subr.mxu0 0.0
        %2276 = vmatpush2.msra.mxu0 0.0
        %2277 = vmatprep.subr.mxu0 0.0
        %2278 = vmatpush2.msra.mxu0 0.0
        %2279 = vmatprep.subr.mxu0 0.0
        %2280 = vmatpush2.msra.mxu0 0.0
        %2281 = vmatprep.subr.mxu0 0.0
        %2282 = vmatpush2.msra.mxu0 0.0
        %2283 = vmatprep.subr.mxu0 0.0
        %2284 = vmatpush2.msra.mxu0 0.0
        %2285 = vmatprep.subr.mxu0 0.0
        %2286 = vmatpush2.msra.mxu0 0.0
        %2287 = vmatprep.subr.mxu0 0.0
        %2288 = vmatpush2.msra.mxu0 0.0
        %2289 = vmatprep.subr.mxu0 0.0
        %2290 = vmatpush2.msra.mxu0 0.0
        %2291 = vmatprep.subr.mxu0 0.0
        %2292 = vmatpush2.msra.mxu0 0.0
        %2293 = vmatprep.subr.mxu0 0.0
        %2294 = vmatpush2.msra.mxu0 0.0
        %2295 = vmatprep.subr.mxu0 0.0
        %2296 = vmatpush2.msra.mxu0 0.0
        %2297 = vmatprep.subr.mxu0 0.0
        %2298 = vmatpush2.msra.mxu0 0.0
        %2299 = vmatprep.subr.mxu0 0.0
        %2300 = vmatpush2.msra.mxu0 0.0
        %2301 = vmatprep.subr.mxu0 0.0
        %2302 = vmatpush2.msra.mxu0 0.0
        %2303 = vmatprep.mubr.f32.mxu0 0.0
        %2304 = vmatmul.mubr.f32.gmra.mxu0 %v2237
        %v2305 = vpop.f32.mrf.mxu0
        %v2306 = vadd.f32 0.0, %v2305
        %v2307 = vpop.f32.mrf.mxu0
        %2308 = vdwg.mxu0
        %v2309 = vcombine.low %v2087, %v2233
        %v2310 = vcombine.high %v2087, %v2233
        %v2312 = vunpack.c.l.s4 1983009808
        %v2313 = vunpack.c.0.s8 %v2312
        %v2314 = vlaneseq
        %v2315 = vshrl.u32 %v2314, 7
        %v2316 = vsub.s32 %v2313, %v2315
        %v2317 = vrot.slane %v2309, %v2316
        %v2319 = vunpack.c.l.s4 1983009808
        %v2320 = vunpack.c.0.s8 %v2319
        %v2321 = vlaneseq
        %v2322 = vshrl.u32 %v2321, 7
        %v2323 = vsub.s32 %v2320, %v2322
        %v2324 = vrot.slane %v2310, %v2323
        %v2325 = vcombine.low %v2160, %v2306
        %v2326 = vcombine.high %v2160, %v2306
        %v2328 = vunpack.c.l.s4 1983009808
        %v2329 = vunpack.c.0.s8 %v2328
        %v2330 = vlaneseq
        %v2331 = vshrl.u32 %v2330, 7
        %v2332 = vsub.s32 %v2329, %v2331
        %v2333 = vrot.slane %v2325, %v2332
        %v2335 = vunpack.c.l.s4 1983009808
        %v2336 = vunpack.c.0.s8 %v2335
        %v2337 = vlaneseq
        %v2338 = vshrl.u32 %v2337, 7
        %v2339 = vsub.s32 %v2336, %v2338
        %v2340 = vrot.slane %v2326, %v2339
        %v2341 = vcombine.low %v2317, %v2333
        %v2342 = vcombine.high %v2317, %v2333
        %v2344 = vunpack.c.l.s4 1934713408
        %v2345 = vunpack.c.0.s8 %v2344
        %v2346 = vlaneseq
        %v2347 = vshrl.u32 %v2346, 7
        %v2348 = vsub.s32 %v2345, %v2347
        %v2349 = vrot.slane %v2341, %v2348
        %v2351 = vunpack.c.l.s4 1934713408
        %v2352 = vunpack.c.0.s8 %v2351
        %v2353 = vlaneseq
        %v2354 = vshrl.u32 %v2353, 7
        %v2355 = vsub.s32 %v2352, %v2354
        %v2356 = vrot.slane %v2342, %v2355
        %v2357 = vcombine.low %v2324, %v2340
        %v2358 = vcombine.high %v2324, %v2340
        %v2360 = vunpack.c.l.s4 1934713408
        %v2361 = vunpack.c.0.s8 %v2360
        %v2362 = vlaneseq
        %v2363 = vshrl.u32 %v2362, 7
        %v2364 = vsub.s32 %v2361, %v2363
        %v2365 = vrot.slane %v2357, %v2364
        %v2367 = vunpack.c.l.s4 1934713408
        %v2368 = vunpack.c.0.s8 %v2367
        %v2369 = vlaneseq
        %v2370 = vshrl.u32 %v2369, 7
        %v2371 = vsub.s32 %v2368, %v2370
        %v2372 = vrot.slane %v2358, %v2371
        %v2373 = vcombine.high %v2349, 0.0
        %v2374 = vcombine.high %v2356, 0.0
        %v2375 = vcombine.high %v2365, 0.0
        %v2376 = vcombine.high %v2372, 0.0
        %v2377 = vcombine.low %v2349, %v2356
        %v2379 = vunpack.c.l.s4 1983009808
        %v2380 = vunpack.c.0.s8 %v2379
        %v2381 = vlaneseq
        %v2382 = vshrl.u32 %v2381, 7
        %v2383 = vsub.s32 %v2380, %v2382
        %v2384 = vrot.slane %v2377, %v2383
        %v2385 = vcombine.low %v2373, %v2374
        %v2387 = vunpack.c.l.s4 1983009808
        %v2388 = vunpack.c.0.s8 %v2387
        %v2389 = vlaneseq
        %v2390 = vshrl.u32 %v2389, 7
        %v2391 = vsub.s32 %v2388, %v2390
        %v2392 = vrot.slane %v2385, %v2391
        %v2393 = vcombine.low %v2365, %v2372
        %v2395 = vunpack.c.l.s4 1983009808
        %v2396 = vunpack.c.0.s8 %v2395
        %v2397 = vlaneseq
        %v2398 = vshrl.u32 %v2397, 7
        %v2399 = vsub.s32 %v2396, %v2398
        %v2400 = vrot.slane %v2393, %v2399
        %v2401 = vcombine.low %v2375, %v2376
        %v2403 = vunpack.c.l.s4 1983009808
        %v2404 = vunpack.c.0.s8 %v2403
        %v2405 = vlaneseq
        %v2406 = vshrl.u32 %v2405, 7
        %v2407 = vsub.s32 %v2404, %v2406
        %v2408 = vrot.slane %v2401, %v2407
        %v2409 = vcombine.low %v2384, %v2392
        %v2410 = vcombine.high %v2384, %v2392
        %v2412 = vunpack.c.l.s4 1934713408
        %v2413 = vunpack.c.0.s8 %v2412
        %v2414 = vlaneseq
        %v2415 = vshrl.u32 %v2414, 7
        %v2416 = vsub.s32 %v2413, %v2415
        %v2417 = vrot.slane %v2409, %v2416
        %v2419 = vunpack.c.l.s4 1934713408
        %v2420 = vunpack.c.0.s8 %v2419
        %v2421 = vlaneseq
        %v2422 = vshrl.u32 %v2421, 7
        %v2423 = vsub.s32 %v2420, %v2422
        %v2424 = vrot.slane %v2410, %v2423
        %v2425 = vcombine.low %v2400, %v2408
        %v2426 = vcombine.high %v2400, %v2408
        %v2428 = vunpack.c.l.s4 1934713408
        %v2429 = vunpack.c.0.s8 %v2428
        %v2430 = vlaneseq
        %v2431 = vshrl.u32 %v2430, 7
        %v2432 = vsub.s32 %v2429, %v2431
        %v2433 = vrot.slane %v2425, %v2432
        %v2435 = vunpack.c.l.s4 1934713408
        %v2436 = vunpack.c.0.s8 %v2435
        %v2437 = vlaneseq
        %v2438 = vshrl.u32 %v2437, 7
        %v2439 = vsub.s32 %v2436, %v2438
        %v2440 = vrot.slane %v2426, %v2439
        %v2441 = vcombine.low %v2417, %v2433
        %v2442 = vcombine.high %v2417, %v2433
        %v2443 = vcombine.low %v2424, %v2440
        %v2444 = vcombine.high %v2424, %v2440
        %v2445 = vld [vmem:[#allocation13] sm:$0xff]
        %v2446 = vld [vmem:[#allocation13 + $0x8] sm:$0xff]
        %v2447 = vld [vmem:[#allocation13 + $0x10] sm:$0xff]
        %v2448 = vld [vmem:[#allocation13 + $0x18] sm:$0xff]
        %v2449 = vld [vmem:[#allocation13 + $0x20] sm:$0xff]
        %v2450 = vld [vmem:[#allocation13 + $0x28] sm:$0xff]
        %v2451 = vld [vmem:[#allocation13 + $0x30] sm:$0xff]
        %v2452 = vld [vmem:[#allocation13 + $0x38] sm:$0xff]
        %v2453 = vld [vmem:[#allocation13 + $0x40] sm:$0xff]
        %v2454 = vld [vmem:[#allocation13 + $0x48] sm:$0xff]
        %v2455 = vld [vmem:[#allocation13 + $0x50] sm:$0xff]
        %v2456 = vld [vmem:[#allocation13 + $0x58] sm:$0xff]
        %v2457 = vld [vmem:[#allocation13 + $0x60] sm:$0xff]
        %v2458 = vld [vmem:[#allocation13 + $0x68] sm:$0xff]
        %v2459 = vld [vmem:[#allocation13 + $0x70] sm:$0xff]
        %v2460 = vld [vmem:[#allocation13 + $0x78] sm:$0xff]
        %v2461 = vld [vmem:[#allocation13 + $0x80] sm:$0xff]
        %v2462 = vld [vmem:[#allocation13 + $0x88] sm:$0xff]
        %v2463 = vld [vmem:[#allocation13 + $0x90] sm:$0xff]
        %v2464 = vld [vmem:[#allocation13 + $0x98] sm:$0xff]
        %v2465 = vld [vmem:[#allocation13 + $0xa0] sm:$0xff]
        %v2466 = vld [vmem:[#allocation13 + $0xa8] sm:$0xff]
        %v2467 = vld [vmem:[#allocation13 + $0xb0] sm:$0xff]
        %v2468 = vld [vmem:[#allocation13 + $0xb8] sm:$0xff]
        %v2469 = vld [vmem:[#allocation13 + $0xc0] sm:$0xff]
        %v2470 = vld [vmem:[#allocation13 + $0xc8] sm:$0xff]
        %v2471 = vld [vmem:[#allocation13 + $0xd0] sm:$0xff]
        %v2472 = vld [vmem:[#allocation13 + $0xd8] sm:$0xff]
        %v2473 = vld [vmem:[#allocation13 + $0xe0] sm:$0xff]
        %v2474 = vld [vmem:[#allocation13 + $0xe8] sm:$0xff]
        %v2475 = vld [vmem:[#allocation13 + $0xf0] sm:$0xff]
        %v2476 = vld [vmem:[#allocation13 + $0xf8] sm:$0xff]
        %v2477 = vld [vmem:[#allocation13 + $0x100] sm:$0xff]
        %v2478 = vld [vmem:[#allocation13 + $0x108] sm:$0xff]
        %v2479 = vld [vmem:[#allocation13 + $0x110] sm:$0xff]
        %v2480 = vld [vmem:[#allocation13 + $0x118] sm:$0xff]
        %v2481 = vld [vmem:[#allocation13 + $0x120] sm:$0xff]
        %v2482 = vld [vmem:[#allocation13 + $0x128] sm:$0xff]
        %v2483 = vld [vmem:[#allocation13 + $0x130] sm:$0xff]
        %v2484 = vld [vmem:[#allocation13 + $0x138] sm:$0xff]
        %v2485 = vld [vmem:[#allocation13 + $0x140] sm:$0xff]
        %v2486 = vld [vmem:[#allocation13 + $0x148] sm:$0xff]
        %v2487 = vld [vmem:[#allocation13 + $0x150] sm:$0xff]
        %v2488 = vld [vmem:[#allocation13 + $0x158] sm:$0xff]
        %v2489 = vld [vmem:[#allocation13 + $0x160] sm:$0xff]
        %v2490 = vld [vmem:[#allocation13 + $0x168] sm:$0xff]
        %v2491 = vld [vmem:[#allocation13 + $0x170] sm:$0xff]
        %v2492 = vld [vmem:[#allocation13 + $0x178] sm:$0xff]
        %v2493 = vld [vmem:[#allocation13 + $0x180] sm:$0xff]
        %v2494 = vld [vmem:[#allocation13 + $0x188] sm:$0xff]
        %v2495 = vld [vmem:[#allocation13 + $0x190] sm:$0xff]
        %v2496 = vld [vmem:[#allocation13 + $0x198] sm:$0xff]
        %v2497 = vld [vmem:[#allocation13 + $0x1a0] sm:$0xff]
        %v2498 = vld [vmem:[#allocation13 + $0x1a8] sm:$0xff]
        %v2499 = vld [vmem:[#allocation13 + $0x1b0] sm:$0xff]
        %v2500 = vld [vmem:[#allocation13 + $0x1b8] sm:$0xff]
        %v2501 = vld [vmem:[#allocation13 + $0x1c0] sm:$0xff]
        %v2502 = vld [vmem:[#allocation13 + $0x1c8] sm:$0xff]
        %v2503 = vld [vmem:[#allocation13 + $0x1d0] sm:$0xff]
        %v2504 = vld [vmem:[#allocation13 + $0x1d8] sm:$0xff]
        %v2505 = vld [vmem:[#allocation13 + $0x1e0] sm:$0xff]
        %v2506 = vld [vmem:[#allocation13 + $0x1e8] sm:$0xff]
        %v2507 = vld [vmem:[#allocation13 + $0x1f0] sm:$0xff]
        %v2508 = vld [vmem:[#allocation13 + $0x1f8] sm:$0xff]
        %v2509 = vld [vmem:[%s10] sm:$0x1]
        %v2511 = vlaneseq
        %v2512 = vshrl.u32 %v2511, 7
        %v2513 = vsub.s32 0, %v2512
        %v2514 = vrot.slane %v2509, %v2513
        %2516 = vmatprep.subr.mxu0 0.0
        %2517 = vmatpush1.msra.mxu0 %v2460
        %2518 = vmatprep.subr.mxu0 0.0
        %2519 = vmatpush1.msra.mxu0 %v2459
        %2520 = vmatprep.subr.mxu0 0.0
        %2521 = vmatpush1.msra.mxu0 %v2458
        %2522 = vmatprep.subr.mxu0 0.0
        %2523 = vmatpush1.msra.mxu0 %v2457
        %2524 = vmatprep.subr.mxu0 0.0
        %2525 = vmatpush1.msra.mxu0 %v2456
        %2526 = vmatprep.subr.mxu0 0.0
        %2527 = vmatpush1.msra.mxu0 %v2455
        %2528 = vmatprep.subr.mxu0 0.0
        %2529 = vmatpush1.msra.mxu0 %v2454
        %2530 = vmatprep.subr.mxu0 0.0
        %2531 = vmatpush1.msra.mxu0 %v2453
        %2532 = vmatprep.subr.mxu0 0.0
        %2533 = vmatpush1.msra.mxu0 %v2452
        %2534 = vmatprep.subr.mxu0 0.0
        %2535 = vmatpush1.msra.mxu0 %v2451
        %2536 = vmatprep.subr.mxu0 0.0
        %2537 = vmatpush1.msra.mxu0 %v2450
        %2538 = vmatprep.subr.mxu0 0.0
        %2539 = vmatpush1.msra.mxu0 %v2449
        %2540 = vmatprep.subr.mxu0 0.0
        %2541 = vmatpush1.msra.mxu0 %v2448
        %2542 = vmatprep.subr.mxu0 0.0
        %2543 = vmatpush1.msra.mxu0 %v2447
        %2544 = vmatprep.subr.mxu0 0.0
        %2545 = vmatpush1.msra.mxu0 %v2446
        %2546 = vmatprep.subr.mxu0 0.0
        %2547 = vmatpush1.msra.mxu0 %v2445
        %2548 = vmatprep.subr.mxu0 0.0
        %2549 = vmatpush2.msra.mxu0 %v2476
        %2550 = vmatprep.subr.mxu0 0.0
        %2551 = vmatpush2.msra.mxu0 %v2475
        %2552 = vmatprep.subr.mxu0 0.0
        %2553 = vmatpush2.msra.mxu0 %v2474
        %2554 = vmatprep.subr.mxu0 0.0
        %2555 = vmatpush2.msra.mxu0 %v2473
        %2556 = vmatprep.subr.mxu0 0.0
        %2557 = vmatpush2.msra.mxu0 %v2472
        %2558 = vmatprep.subr.mxu0 0.0
        %2559 = vmatpush2.msra.mxu0 %v2471
        %2560 = vmatprep.subr.mxu0 0.0
        %2561 = vmatpush2.msra.mxu0 %v2470
        %2562 = vmatprep.subr.mxu0 0.0
        %2563 = vmatpush2.msra.mxu0 %v2469
        %2564 = vmatprep.subr.mxu0 0.0
        %2565 = vmatpush2.msra.mxu0 %v2468
        %2566 = vmatprep.subr.mxu0 0.0
        %2567 = vmatpush2.msra.mxu0 %v2467
        %2568 = vmatprep.subr.mxu0 0.0
        %2569 = vmatpush2.msra.mxu0 %v2466
        %2570 = vmatprep.subr.mxu0 0.0
        %2571 = vmatpush2.msra.mxu0 %v2465
        %2572 = vmatprep.subr.mxu0 0.0
        %2573 = vmatpush2.msra.mxu0 %v2464
        %2574 = vmatprep.subr.mxu0 0.0
        %2575 = vmatpush2.msra.mxu0 %v2463
        %2576 = vmatprep.subr.mxu0 0.0
        %2577 = vmatpush2.msra.mxu0 %v2462
        %2578 = vmatprep.subr.mxu0 0.0
        %2579 = vmatpush2.msra.mxu0 %v2461
        %2580 = vmatprep.mubr.f32.mxu0 %v2442
        %2581 = vmatmul.mubr.f32.gmra.mxu0 %v2441
        %v2582 = vpop.f32.mrf.mxu0
        %v2583 = vadd.f32 %v2514, %v2582
        %v2584 = vpop.f32.mrf.mxu0
        %2585 = vdwg.mxu0
        %2586 = vmatprep.subr.mxu0 0.0
        %2587 = vmatpush1.msra.mxu0 %v2492
        %2588 = vmatprep.subr.mxu0 0.0
        %2589 = vmatpush1.msra.mxu0 %v2491
        %2590 = vmatprep.subr.mxu0 0.0
        %2591 = vmatpush1.msra.mxu0 %v2490
        %2592 = vmatprep.subr.mxu0 0.0
        %2593 = vmatpush1.msra.mxu0 %v2489
        %2594 = vmatprep.subr.mxu0 0.0
        %2595 = vmatpush1.msra.mxu0 %v2488
        %2596 = vmatprep.subr.mxu0 0.0
        %2597 = vmatpush1.msra.mxu0 %v2487
        %2598 = vmatprep.subr.mxu0 0.0
        %2599 = vmatpush1.msra.mxu0 %v2486
        %2600 = vmatprep.subr.mxu0 0.0
        %2601 = vmatpush1.msra.mxu0 %v2485
        %2602 = vmatprep.subr.mxu0 0.0
        %2603 = vmatpush1.msra.mxu0 %v2484
        %2604 = vmatprep.subr.mxu0 0.0
        %2605 = vmatpush1.msra.mxu0 %v2483
        %2606 = vmatprep.subr.mxu0 0.0
        %2607 = vmatpush1.msra.mxu0 %v2482
        %2608 = vmatprep.subr.mxu0 0.0
        %2609 = vmatpush1.msra.mxu0 %v2481
        %2610 = vmatprep.subr.mxu0 0.0
        %2611 = vmatpush1.msra.mxu0 %v2480
        %2612 = vmatprep.subr.mxu0 0.0
        %2613 = vmatpush1.msra.mxu0 %v2479
        %2614 = vmatprep.subr.mxu0 0.0
        %2615 = vmatpush1.msra.mxu0 %v2478
        %2616 = vmatprep.subr.mxu0 0.0
        %2617 = vmatpush1.msra.mxu0 %v2477
        %2618 = vmatprep.subr.mxu0 0.0
        %2619 = vmatpush2.msra.mxu0 %v2508
        %2620 = vmatprep.subr.mxu0 0.0
        %2621 = vmatpush2.msra.mxu0 %v2507
        %2622 = vmatprep.subr.mxu0 0.0
        %2623 = vmatpush2.msra.mxu0 %v2506
        %2624 = vmatprep.subr.mxu0 0.0
        %2625 = vmatpush2.msra.mxu0 %v2505
        %2626 = vmatprep.subr.mxu0 0.0
        %2627 = vmatpush2.msra.mxu0 %v2504
        %2628 = vmatprep.subr.mxu0 0.0
        %2629 = vmatpush2.msra.mxu0 %v2503
        %2630 = vmatprep.subr.mxu0 0.0
        %2631 = vmatpush2.msra.mxu0 %v2502
        %2632 = vmatprep.subr.mxu0 0.0
        %2633 = vmatpush2.msra.mxu0 %v2501
        %2634 = vmatprep.subr.mxu0 0.0
        %2635 = vmatpush2.msra.mxu0 %v2500
        %2636 = vmatprep.subr.mxu0 0.0
        %2637 = vmatpush2.msra.mxu0 %v2499
        %2638 = vmatprep.subr.mxu0 0.0
        %2639 = vmatpush2.msra.mxu0 %v2498
        %2640 = vmatprep.subr.mxu0 0.0
        %2641 = vmatpush2.msra.mxu0 %v2497
        %2642 = vmatprep.subr.mxu0 0.0
        %2643 = vmatpush2.msra.mxu0 %v2496
        %2644 = vmatprep.subr.mxu0 0.0
        %2645 = vmatpush2.msra.mxu0 %v2495
        %2646 = vmatprep.subr.mxu0 0.0
        %2647 = vmatpush2.msra.mxu0 %v2494
        %2648 = vmatprep.subr.mxu0 0.0
        %2649 = vmatpush2.msra.mxu0 %v2493
        %2650 = vmatprep.mubr.f32.mxu0 %v2444
        %2651 = vmatmul.mubr.f32.gmra.mxu0 %v2443
        %v2652 = vpop.f32.mrf.mxu0
        %v2653 = vadd.f32 %v2583, %v2652
        %v2654 = vpop.f32.mrf.mxu0
        %2655 = vdwg.mxu0
        %v2656 = vadd.f32 %v585, %v2653
        %2657 = vadd.xlane.f32.xlu0 %v2656
        %v2658 = vpop.xlane.xlu0 %2657
        %v2659 = vmul.f32 %v2658, 0.03125
        %v2660 = vlaneseq
        %v2661 = vand.u32 %v2660, 127
        %vm2662 = vcmp.lt.s32.totalorder %v2661, 32
        %v2663 = vsub.f32 %v2656, %v2659
        %v2664 = vsel %vm2662, %v2663, 0.0
        %v2665 = vmul.f32 %v2664, %v2664
        %2666 = vadd.xlane.f32.xlu0 %v2665
        %v2667 = vpop.xlane.xlu0 %2666
        %v2668 = vmul.f32 %v2667, 0.03125
        %v2669 = vadd.f32 %v2668, 1e-05
        %v2670 = vrsqrt.pop %v2669
        %v2671 = vmul.f32 %v2664, %v2670
        %v2672 = vld [vmem:[%s11] sm:$0x1]
        %v2674 = vlaneseq
        %v2675 = vshrl.u32 %v2674, 7
        %v2676 = vsub.s32 0, %v2675
        %v2677 = vrot.slane %v2672, %v2676
        %v2679 = vmul.f32 %v2671, %v2677
        %v2680 = vld [vmem:[%s12] sm:$0x1]
        %v2682 = vlaneseq
        %v2683 = vshrl.u32 %v2682, 7
        %v2684 = vsub.s32 0, %v2683
        %v2685 = vrot.slane %v2680, %v2684
        %v2687 = vadd.f32 %v2679, %v2685
        %2688 = vst [vmem:[%s584] sm:$0xff] %v2687
        %s2689 = sand.u32 %s331, 1
        %s2690 = scalar_lea.sflag [#allocation4], %s2689
        %s2691 = sand.u32 %s331, 1
        %s2692 = smul.addr %s2691, 8
        %s2693 = scalar_lea.vmem [#allocation14], %s2692
        // Predicated region
        $region101: #{tpu_custom_call.1} parent=71 // pred_check
          %p2694 = pneg %p341
        $region102: #{tpu_custom_call.1} parent=71 // pred_check_branch
          %2696 = sbr.rel (%p2694) target = $region104
        $region103: #{tpu_custom_call.1} parent=71 // pred_region
          %s2698 = ssub.s32 128, 128
          %2699 = vsyncadd %s2690, %s2698
          %s2700 = smul.addr %s35, 128
          %s2701 = scalar_lea.hbm %s13, %s2700
          %s2703 = sshll.u32 %s2693, 4
          %s2704 = int_to_ptr.vmem [resolvable:$true] %s2703
          %2706 = dma.vmem_to_hbm [thread:$0]  %s2704, 128, %s2701, %s2690
        $region104: #{tpu_custom_call.1} parent=71 // pred_fallthru
          _
      $region72: #{tpu_custom_call.1} parent=5 // pred_fallthru
        _
      %p2707 = scmp.le.s32.totalorder 2, %s30
      // Predicated region
      $region105: #{tpu_custom_call.1} parent=5 // pred_check
        %p2708 = pneg %p2707
      $region106: #{tpu_custom_call.1} parent=5 // pred_check_branch
        %2710 = sbr.rel (%p2708) target = $region108
      $region107: #{tpu_custom_call.1} parent=5 // pred_region
        %s2711 = ssub.s32 %s30, 2
        // Predicated region
        $region109: #{tpu_custom_call.1} parent=107 // pred_check
          %p2712 = pneg %p347
        $region110: #{tpu_custom_call.1} parent=107 // pred_check_branch
          %2714 = sbr.rel (%p2712) target = $region112
        $region111: #{tpu_custom_call.1} parent=107 // pred_region
          %s2715 = sand.u32 %s332, 1
          %s2716 = scalar_lea.sflag [#allocation4], %s2715
          %s2717 = sand.u32 %s332, 1
          %s2718 = smul.addr %s2717, 8
          %s2719 = scalar_lea.vmem [#allocation14], %s2718
          %2720 = dma.done %s2716, 128
        $region112: #{tpu_custom_call.1} parent=107 // pred_fallthru
          _
      $region108: #{tpu_custom_call.1} parent=5 // pred_fallthru
        _
    $region6: #{tpu_custom_call.1} parent=1 // loop_footer
      %s34 = sadd.s32 1, %s30
    $region7: #{tpu_custom_call.1} parent=1 // loop_footer_branch
      %29 = sbr.rel target = $region3
    $region8: #{tpu_custom_call.1} parent=1 // loop_exit
      _
    %2721 = vsyncpa [#allocation3], 1
    %s2722 = scalar_lea.sflag [#allocation3], 1
    %2723 = vsyncpa %s2722, 1
    %2724 = vsyncpa [#allocation6], 1
    %s2725 = scalar_lea.sflag [#allocation6], 1
    %2726 = vsyncpa %s2725, 1
    %2727 = vsyncpa [#allocation9], 1
    %2728 = vsyncpa [#allocation12], 1
    %2729 = vsyncpa [#allocation4], 1
    %s2730 = scalar_lea.sflag [#allocation4], 1
    %2731 = vsyncpa %s2730, 1

</llo_original>
